<compile_context>
chip_gen: v5e
topology: v5e:2x2
jax: 0.10.0
libtpu: 0.0.40
codegen_flags: <defaults>
</compile_context>

<pallas_src>
import functools

import jax
import jax.numpy as jnp
from jax.experimental import pallas as pl
from jax.experimental.pallas import tpu as pltpu

LANE = 128
TB_CAP = 512          # max batch-tile rows (multiple of 8)
TB_SPLIT = 256        # try to form >=2 tiles once B >= 2*TB_SPLIT (v7x megacore)
PALLAS_MIN_BATCH = 256  # below this, the pure-JAX path is faster


def _round_up(n, m):
    return ((n + m - 1) // m) * m


def _pad2(a, rows, cols):
    r, c = a.shape
    return jnp.pad(a, ((0, rows - r), (0, cols - c)))


# --------------------------------------------------------------------------
# Kernel
# --------------------------------------------------------------------------
def _mlp_kernel(x_ref,
                w1_ref, b1_ref,
                w2_ref, b2_ref,
                w3_ref, b3_ref,
                w4_ref, b4_ref,
                o_ref):
    # x arrives already in bf16; all matmuls are bf16 on the MXU with f32
    # accumulation.  Bias add / ReLU / sigmoid stay in f32 (avoids bf16 VPU
    # ops on v5e).  Dropout == identity (inference semantics).
    h = jnp.dot(x_ref[...], w1_ref[...], preferred_element_type=jnp.float32)
    h = jnp.maximum(h + b1_ref[...], 0.0)

    h = jnp.dot(h.astype(jnp.bfloat16), w2_ref[...],
                preferred_element_type=jnp.float32)
    h = jnp.maximum(h + b2_ref[...], 0.0)

    h = jnp.dot(h.astype(jnp.bfloat16), w3_ref[...],
                preferred_element_type=jnp.float32)
    h = jnp.maximum(h + b3_ref[...], 0.0)

    logits = jnp.dot(h.astype(jnp.bfloat16), w4_ref[...],
                     preferred_element_type=jnp.float32)
    o_ref[...] = jax.nn.sigmoid(logits + b4_ref[...])


# --------------------------------------------------------------------------
# Parameter preparation (done ONCE, outside the per-call path)
# --------------------------------------------------------------------------
def prepare_params(params):
    """Pad hidden feature dims to 128-lane multiples and cast weights to bf16.

    params: (w1, b1, w2, b2, w3, b3, w4, b4); w_i [in_i, out_i], b_i [1, out_i].
    The input feature dim of layer 1 and the output dim of the last layer are
    left unpadded.  Padding is zero, so it cannot leak through ReLU.
    """
    ws = list(params[0::2])
    bs = list(params[1::2])
    n = len(ws)
    ws_p, bs_p = [], []
    for i, (w, b) in enumerate(zip(ws, bs)):
        in_dim, out_dim = w.shape
        in_pad = in_dim if i == 0 else _round_up(in_dim, LANE)
        out_pad = out_dim if i == n - 1 else _round_up(out_dim, LANE)
        ws_p.append(_pad2(w, in_pad, out_pad).astype(jnp.bfloat16))
        bs_p.append(_pad2(b, 1, out_pad).astype(jnp.float32))
    return tuple(ws_p), tuple(bs_p)


# --------------------------------------------------------------------------
# Forward paths
# --------------------------------------------------------------------------
def _forward_dense(x, prepared):
    """Pure-JAX fused path for small batches (same mixed precision)."""
    ws_p, bs_p = prepared
    h = x.astype(jnp.bfloat16)
    n = len(ws_p)
    for i, (w, b) in enumerate(zip(ws_p, bs_p)):
        z = jnp.dot(h, w, preferred_element_type=jnp.float32) + b
        if i < n - 1:
            h = jnp.maximum(z, 0.0).astype(jnp.bfloat16)
        else:
            return jax.nn.sigmoid(z)


def _choose_tile(B):
    B8 = _round_up(B, 8)
    if B8 < 2 * TB_SPLIT:
        tb = B8                                   # single tile
    else:
        # >= 2 grid steps so v7x's two TensorCores both get work, capped so
        # per-step VMEM stays tiny.
        tb = min(TB_CAP, _round_up(-(-B8 // 2), 8))
    return tb, _round_up(B8, tb)


def _forward_pallas(x, prepared):
    ws_p, bs_p = prepared
    B, in_size = x.shape
    out_size = ws_p[-1].shape[1]

    TB, B_pad = _choose_tile(B)
    grid = (B_pad // TB,)

    # Single cast (bf16) + optional batch pad — the only per-call wrapper ops.
    xb = x.astype(jnp.bfloat16)
    if B_pad != B:
        xb = jnp.pad(xb, ((0, B_pad - B), (0, 0)))

    def resident(arr):
        # Same block index every grid step -> kept VMEM-resident (one DMA).
        return pl.BlockSpec(arr.shape, lambda i: (0, 0))

    in_specs = [pl.BlockSpec((TB, in_size), lambda i: (i, 0))]
    args = [xb]
    for w, b in zip(ws_p, bs_p):
        in_specs += [resident(w), resident(b)]
        args += [w, b]

    out_specs = pl.BlockSpec((TB, out_size), lambda i: (i, 0))
    out_shape = jax.ShapeDtypeStruct((B_pad, out_size), jnp.float32)

    out_padded = pl.pallas_call(
        _mlp_kernel,
        out_shape=out_shape,
        grid_spec=pltpu.PrefetchScalarGridSpec(
            num_scalar_prefetch=0,
            grid=grid,
            in_specs=in_specs,
            out_specs=out_specs,
        ),
        compiler_params=pltpu.CompilerParams(
            dimension_semantics=("parallel",),
        ),
    )(*args)

    return out_padded[:B] if B_pad != B else out_padded


def basic_nn_forward(x, prepared):
    """Fused forward pass of BasicNN (eval-mode dropout == identity).

    x: [B, input_size] float32;  prepared: output of prepare_params(params).
    """
    if x.shape[0] < PALLAS_MIN_BATCH:
        return _forward_dense(x, prepared)
    return _forward_pallas(x, prepared)


# --------------------------------------------------------------------------
# Reference + init
# --------------------------------------------------------------------------
def _init_params(key, input_size, hidden_sizes, output_size):
    sizes = [input_size] + list(hidden_sizes) + [output_size]
    params = []
    for i in range(len(sizes) - 1):
        fan_in, fan_out = sizes[i], sizes[i + 1]
        key, kw, kb = jax.random.split(key, 3)
        bound = 1.0 / jnp.sqrt(jnp.float32(fan_in))
        w = jax.random.uniform(kw, (fan_in, fan_out), jnp.float32, -bound, bound)
        b = jax.random.uniform(kb, (1, fan_out), jnp.float32, -bound, bound)
        params += [w, b]
    return tuple(params)


def _reference_forward(x, params):
    """Pure-JAX reference (unpadded params, same bf16-dot / f32-acc precision)."""
    (w1, b1, w2, b2, w3, b3, w4, b4) = params

    def lin(a, w, b):
        return jnp.dot(a.astype(jnp.bfloat16), w.astype(jnp.bfloat16),
                       preferred_element_type=jnp.float32) + b

    h = jnp.maximum(lin(x, w1, b1), 0.0)
    h = jnp.maximum(lin(h, w2, b2), 0.0)
    h = jnp.maximum(lin(h, w3, b3), 0.0)
    return jax.nn.sigmoid(lin(h, w4, b4))


# --------------------------------------------------------------------------
if __name__ == "__main__":
    INPUT_SIZE = 16
    HIDDEN_SIZES = [32, 64, 32]   # NUM_HIDDEN_LAYERS = 3
    OUTPUT_SIZE = 4

    key = jax.random.PRNGKey(0)
    key, kx_big, kx_small = jax.random.split(key, 3)
    params = _init_params(key, INPUT_SIZE, HIDDEN_SIZES, OUTPUT_SIZE)
    prepared = prepare_params(params)      # padded/cast once, reused per call

    fwd = jax.jit(functools.partial(basic_nn_forward, prepared=prepared))

    # 1) Pallas path: batch large enough for a >=2-step parallel grid (TB=512).
    B_BIG = 1024
    x_big = jax.random.normal(kx_big, (B_BIG, INPUT_SIZE), jnp.float32)
    out_big = jax.block_until_ready(fwd(x_big))
    ref_big = _reference_forward(x_big, params)
    assert out_big.shape == (B_BIG, OUTPUT_SIZE)
    assert jnp.allclose(out_big, ref_big, atol=1e-4, rtol=1e-4), \
        "Pallas path mismatch vs JAX reference"

    # 2) Small-batch path: dispatches to the fused pure-JAX fallback.
    B_SMALL = 8
    x_small = jax.random.normal(kx_small, (B_SMALL, INPUT_SIZE), jnp.float32)
    out_small = jax.block_until_ready(fwd(x_small))
    ref_small = _reference_forward(x_small, params)
    assert out_small.shape == (B_SMALL, OUTPUT_SIZE)
    assert jnp.allclose(out_small, ref_small, atol=1e-4, rtol=1e-4), \
        "small-batch path mismatch vs JAX reference"

    print("KERNEL_OK")
</pallas_src>

<mosaic_0001>
module attributes {stable_mosaic.version = 11 : i64} {
  func.func @_mlp_kernel(%arg0: i32, %arg1: memref<512x16xbf16, #tpu.memory_space<vmem>>, %arg2: memref<16x128xbf16, #tpu.memory_space<vmem>>, %arg3: memref<1x128xf32, #tpu.memory_space<vmem>>, %arg4: memref<128x128xbf16, #tpu.memory_space<vmem>>, %arg5: memref<1x128xf32, #tpu.memory_space<vmem>>, %arg6: memref<128x128xbf16, #tpu.memory_space<vmem>>, %arg7: memref<1x128xf32, #tpu.memory_space<vmem>>, %arg8: memref<128x4xbf16, #tpu.memory_space<vmem>>, %arg9: memref<1x4xf32, #tpu.memory_space<vmem>>, %arg10: memref<512x4xf32, #tpu.memory_space<vmem>>) attributes {dimension_semantics = [#tpu.dimension_semantics<parallel>], iteration_bounds = array<i64: 2>, scalar_prefetch = 0 : i64, scratch_operands = 0 : i64, tpu.core_type = #tpu.core_type<tc>, window_params = [{transform_indices = @transform_0, window_bounds = array<i64: 512, 16>}, {pipeline_mode = #tpu.pipeline_mode<synchronous>, transform_indices = @transform_1, window_bounds = array<i64: 16, 128>}, {pipeline_mode = #tpu.pipeline_mode<synchronous>, transform_indices = @transform_2, window_bounds = array<i64: 1, 128>}, {pipeline_mode = #tpu.pipeline_mode<synchronous>, transform_indices = @transform_3, window_bounds = array<i64: 128, 128>}, {pipeline_mode = #tpu.pipeline_mode<synchronous>, transform_indices = @transform_4, window_bounds = array<i64: 1, 128>}, {pipeline_mode = #tpu.pipeline_mode<synchronous>, transform_indices = @transform_5, window_bounds = array<i64: 128, 128>}, {pipeline_mode = #tpu.pipeline_mode<synchronous>, transform_indices = @transform_6, window_bounds = array<i64: 1, 128>}, {pipeline_mode = #tpu.pipeline_mode<synchronous>, transform_indices = @transform_7, window_bounds = array<i64: 128, 4>}, {pipeline_mode = #tpu.pipeline_mode<synchronous>, transform_indices = @transform_8, window_bounds = array<i64: 1, 4>}, {transform_indices = @transform_9, window_bounds = array<i64: 512, 4>}]} {
    %c0 = arith.constant 0 : index
    %c0_0 = arith.constant 0 : index
    %0 = vector.load %arg1[%c0, %c0_0] : memref<512x16xbf16, #tpu.memory_space<vmem>>, vector<512x16xbf16>
    %c0_1 = arith.constant 0 : index
    %c0_2 = arith.constant 0 : index
    %1 = vector.load %arg2[%c0_1, %c0_2] : memref<16x128xbf16, #tpu.memory_space<vmem>>, vector<16x128xbf16>
    %cst = arith.constant dense<0.000000e+00> : vector<512x128xf32>
    %2 = tpu.matmul %0, %1, %cst {dimension_numbers = #tpu.dot_dimension_numbers<[1], [0], [0], [1], [0, 0, 1, 1], [], []>} : vector<512x16xbf16>, vector<16x128xbf16>, vector<512x128xf32> -> vector<512x128xf32>
    %c0_3 = arith.constant 0 : index
    %c0_4 = arith.constant 0 : index
    %3 = vector.load %arg3[%c0_3, %c0_4] : memref<1x128xf32, #tpu.memory_space<vmem>>, vector<1x128xf32>
    %4 = vector.broadcast %3 : vector<1x128xf32> to vector<512x128xf32>
    %5 = arith.addf %2, %4 : vector<512x128xf32>
    %cst_5 = arith.constant 0.000000e+00 : f32
    %6 = vector.broadcast %cst_5 : f32 to vector<512x128xf32>
    %7 = arith.maximumf %5, %6 : vector<512x128xf32>
    %8 = arith.truncf %7 : vector<512x128xf32> to vector<512x128xbf16>
    %c0_6 = arith.constant 0 : index
    %c0_7 = arith.constant 0 : index
    %9 = vector.load %arg4[%c0_6, %c0_7] : memref<128x128xbf16, #tpu.memory_space<vmem>>, vector<128x128xbf16>
    %cst_8 = arith.constant dense<0.000000e+00> : vector<512x128xf32>
    %10 = tpu.matmul %8, %9, %cst_8 {dimension_numbers = #tpu.dot_dimension_numbers<[1], [0], [0], [1], [0, 0, 1, 1], [], []>} : vector<512x128xbf16>, vector<128x128xbf16>, vector<512x128xf32> -> vector<512x128xf32>
    %c0_9 = arith.constant 0 : index
    %c0_10 = arith.constant 0 : index
    %11 = vector.load %arg5[%c0_9, %c0_10] : memref<1x128xf32, #tpu.memory_space<vmem>>, vector<1x128xf32>
    %12 = vector.broadcast %11 : vector<1x128xf32> to vector<512x128xf32>
    %13 = arith.addf %10, %12 : vector<512x128xf32>
    %cst_11 = arith.constant 0.000000e+00 : f32
    %14 = vector.broadcast %cst_11 : f32 to vector<512x128xf32>
    %15 = arith.maximumf %13, %14 : vector<512x128xf32>
    %16 = arith.truncf %15 : vector<512x128xf32> to vector<512x128xbf16>
    %c0_12 = arith.constant 0 : index
    %c0_13 = arith.constant 0 : index
    %17 = vector.load %arg6[%c0_12, %c0_13] : memref<128x128xbf16, #tpu.memory_space<vmem>>, vector<128x128xbf16>
    %cst_14 = arith.constant dense<0.000000e+00> : vector<512x128xf32>
    %18 = tpu.matmul %16, %17, %cst_14 {dimension_numbers = #tpu.dot_dimension_numbers<[1], [0], [0], [1], [0, 0, 1, 1], [], []>} : vector<512x128xbf16>, vector<128x128xbf16>, vector<512x128xf32> -> vector<512x128xf32>
    %c0_15 = arith.constant 0 : index
    %c0_16 = arith.constant 0 : index
    %19 = vector.load %arg7[%c0_15, %c0_16] : memref<1x128xf32, #tpu.memory_space<vmem>>, vector<1x128xf32>
    %20 = vector.broadcast %19 : vector<1x128xf32> to vector<512x128xf32>
    %21 = arith.addf %18, %20 : vector<512x128xf32>
    %cst_17 = arith.constant 0.000000e+00 : f32
    %22 = vector.broadcast %cst_17 : f32 to vector<512x128xf32>
    %23 = arith.maximumf %21, %22 : vector<512x128xf32>
    %24 = arith.truncf %23 : vector<512x128xf32> to vector<512x128xbf16>
    %c0_18 = arith.constant 0 : index
    %c0_19 = arith.constant 0 : index
    %25 = vector.load %arg8[%c0_18, %c0_19] : memref<128x4xbf16, #tpu.memory_space<vmem>>, vector<128x4xbf16>
    %cst_20 = arith.constant dense<0.000000e+00> : vector<512x4xf32>
    %26 = tpu.matmul %24, %25, %cst_20 {dimension_numbers = #tpu.dot_dimension_numbers<[1], [0], [0], [1], [0, 0, 1, 1], [], []>} : vector<512x128xbf16>, vector<128x4xbf16>, vector<512x4xf32> -> vector<512x4xf32>
    %c0_21 = arith.constant 0 : index
    %c0_22 = arith.constant 0 : index
    %27 = vector.load %arg9[%c0_21, %c0_22] : memref<1x4xf32, #tpu.memory_space<vmem>>, vector<1x4xf32>
    %28 = vector.broadcast %27 : vector<1x4xf32> to vector<512x4xf32>
    %29 = arith.addf %26, %28 : vector<512x4xf32>
    %30 = arith.negf %29 : vector<512x4xf32>
    %31 = math.exp %30 : vector<512x4xf32>
    %cst_23 = arith.constant 1.000000e+00 : f32
    %32 = vector.broadcast %cst_23 : f32 to vector<512x4xf32>
    %33 = arith.addf %32, %31 : vector<512x4xf32>
    %34 = arith.divf %32, %33 : vector<512x4xf32>
    %c0_24 = arith.constant 0 : index
    %c0_25 = arith.constant 0 : index
    %35 = vector.load %arg10[%c0_24, %c0_25] : memref<512x4xf32, #tpu.memory_space<vmem>>, vector<512x4xf32>
    tpu.vector_store %arg10[%c0_24, %c0_25], %34 {strides = array<i32>} : memref<512x4xf32, #tpu.memory_space<vmem>>, vector<512x4xf32>,
    return
  }
  func.func @transform_0(%arg0: i32) -> (i32, i32) {
    %c0_i32 = arith.constant 0 : i32
    %c0_i32_0 = arith.constant 0 : i32
    return %arg0, %c0_i32 : i32, i32
  }
  func.func @transform_1(%arg0: i32) -> (i32, i32) {
    %c0_i32 = arith.constant 0 : i32
    %c0_i32_0 = arith.constant 0 : i32
    %c0_i32_1 = arith.constant 0 : i32
    return %c0_i32, %c0_i32_0 : i32, i32
  }
  func.func @transform_2(%arg0: i32) -> (i32, i32) {
    %c0_i32 = arith.constant 0 : i32
    %c0_i32_0 = arith.constant 0 : i32
    %c0_i32_1 = arith.constant 0 : i32
    return %c0_i32, %c0_i32_0 : i32, i32
  }
  func.func @transform_3(%arg0: i32) -> (i32, i32) {
    %c0_i32 = arith.constant 0 : i32
    %c0_i32_0 = arith.constant 0 : i32
    %c0_i32_1 = arith.constant 0 : i32
    return %c0_i32, %c0_i32_0 : i32, i32
  }
  func.func @transform_4(%arg0: i32) -> (i32, i32) {
    %c0_i32 = arith.constant 0 : i32
    %c0_i32_0 = arith.constant 0 : i32
    %c0_i32_1 = arith.constant 0 : i32
    return %c0_i32, %c0_i32_0 : i32, i32
  }
  func.func @transform_5(%arg0: i32) -> (i32, i32) {
    %c0_i32 = arith.constant 0 : i32
    %c0_i32_0 = arith.constant 0 : i32
    %c0_i32_1 = arith.constant 0 : i32
    return %c0_i32, %c0_i32_0 : i32, i32
  }
  func.func @transform_6(%arg0: i32) -> (i32, i32) {
    %c0_i32 = arith.constant 0 : i32
    %c0_i32_0 = arith.constant 0 : i32
    %c0_i32_1 = arith.constant 0 : i32
    return %c0_i32, %c0_i32_0 : i32, i32
  }
  func.func @transform_7(%arg0: i32) -> (i32, i32) {
    %c0_i32 = arith.constant 0 : i32
    %c0_i32_0 = arith.constant 0 : i32
    %c0_i32_1 = arith.constant 0 : i32
    return %c0_i32, %c0_i32_0 : i32, i32
  }
  func.func @transform_8(%arg0: i32) -> (i32, i32) {
    %c0_i32 = arith.constant 0 : i32
    %c0_i32_0 = arith.constant 0 : i32
    %c0_i32_1 = arith.constant 0 : i32
    return %c0_i32, %c0_i32_0 : i32, i32
  }
  func.func @transform_9(%arg0: i32) -> (i32, i32) {
    %c0_i32 = arith.constant 0 : i32
    %c0_i32_0 = arith.constant 0 : i32
    return %arg0, %c0_i32 : i32, i32
  }
}

</mosaic_0001>

<llo_original>
// kernel: basic_nn_forward.1
$region0: #{basic_nn_forward.1}
  #allocation0 [shape = 'u32[]', space=smem, size = 0x4, offset = 0x4, fixed_abs, tag = 'smem constant byte address 0x4 - core index']
  #allocation1 [shape = 'u32[72,128]{1,0:T(1,128)}', space=vmem, size = 0x9000, scoped, tag = 'internal scratch']
  %s0 = inlined_call_operand.vmem [shape: bf16[1024,16], index: 0, kind: input, shape index: {}]
  %s1 = inlined_call_operand.vmem [shape: bf16[16,128], index: 1, kind: input, shape index: {}]
  %s2 = inlined_call_operand.vmem [shape: f32[1,128], index: 2, kind: input, shape index: {}]
  %s3 = inlined_call_operand.vmem [shape: bf16[128,128], index: 3, kind: input, shape index: {}]
  %s4 = inlined_call_operand.vmem [shape: f32[1,128], index: 4, kind: input, shape index: {}]
  %s5 = inlined_call_operand.vmem [shape: bf16[128,128], index: 5, kind: input, shape index: {}]
  %s6 = inlined_call_operand.vmem [shape: f32[1,128], index: 6, kind: input, shape index: {}]
  %s7 = inlined_call_operand.vmem [shape: bf16[128,4], index: 7, kind: input, shape index: {}]
  %s8 = inlined_call_operand.vmem [shape: f32[1,4], index: 8, kind: input, shape index: {}]
  %s9 = inlined_call_operand.vmem [shape: f32[1024,4], index: 9, kind: output, shape index: {}]
  %s10 = sld [smem:[#allocation0]]
  $region69: #{basic_nn_forward.1} parent=0
    _
  %s12 = ssub.s32 1, %s10
  %s13 = scalar_select 0, %s12, %s10
  loop: start=0, step=1, limit=4
  $region2: #{basic_nn_forward.1} parent=0 // loop_pre_header
    _
  $region3: #{basic_nn_forward.1} parent=0 // loop_header
    %s15 = sphi 0, %s19
    %p16 = scmp.ge.s32.totalorder %s15, 4
    %s25 = sphi 0, %s27
    %s28 = sphi 0, %s25
    %s29 = sphi 0, %s28
    %s45 = sphi 0, %s29
    %s49 = sphi 0, %s49
    %s51 = sphi 0, %s49
    %s52 = sphi 0, %s51
    %s66 = sphi 0, %s52
    %s70 = sphi 0, %s70
    %s72 = sphi 0, %s70
    %s73 = sphi 0, %s72
    %s87 = sphi 0, %s73
    %s91 = sphi 0, %s91
    %s93 = sphi 0, %s91
    %s94 = sphi 0, %s93
    %s108 = sphi 0, %s94
    %s112 = sphi 0, %s112
    %s114 = sphi 0, %s112
    %s115 = sphi 0, %s114
    %s129 = sphi 0, %s115
    %s133 = sphi 0, %s133
    %s135 = sphi 0, %s133
    %s136 = sphi 0, %s135
    %s150 = sphi 0, %s136
    %s154 = sphi 0, %s154
    %s156 = sphi 0, %s154
    %s157 = sphi 0, %s156
    %s171 = sphi 0, %s157
    %s175 = sphi 0, %s175
    %s177 = sphi 0, %s175
    %s178 = sphi 0, %s177
    %s192 = sphi 0, %s178
    %s196 = sphi 0, %s196
    %s198 = sphi 0, %s196
    %s199 = sphi 0, %s198
    %s213 = sphi 0, %s199
    %s219 = sphi 0, %s221
    %s222 = sphi 0, %s219
    %s223 = sphi 0, %s222
    %s239 = sphi 0, %s223
  $region4: #{basic_nn_forward.1} parent=0 // loop_header_branch
    %18 = sbr.rel (%p16) target = $region8
  $region5: #{basic_nn_forward.1} parent=0 // loop_body
    %s20 = ssub.s32 %s15, 1
    %s21 = ssub.s32 %s15, 2
    %s22 = sadd.s32 %s15, 1
    %s23 = ssub.s32 %s15, %s22
    %p24 = scmp.eq.s32.totalorder %s23, 0
    %s26 = sadd.s32 %s25, 1
    %s27 = scalar_select %p24, %s25, %s26
    %p30 = pneg %p24
    %p31 = scmp.eq.s32.totalorder %s15, 1
    %p32 = por %p30, %p31
    %p33 = scmp.ne.s32.totalorder %s25, %s28
    %p34 = scmp.eq.s32.totalorder %s15, 0
    %p35 = por %p33, %p34
    %p36 = scmp.ne.s32.totalorder %s25, %s28
    %p37 = scmp.eq.s32.totalorder %s20, 1
    %p38 = por %p36, %p37
    %p39 = scmp.ne.s32.totalorder %s28, %s29
    %p40 = scmp.eq.s32.totalorder %s20, 0
    %p41 = por %p39, %p40
    %p42 = scmp.ne.s32.totalorder %s28, %s29
    %p43 = scmp.eq.s32.totalorder %s21, 1
    %p44 = por %p42, %p43
    %p46 = scmp.ne.s32.totalorder %s29, %s45
    %p47 = scmp.eq.s32.totalorder %s21, 0
    %p48 = por %p46, %p47
    %s50 = sadd.s32 %s49, 1
    %p53 = scmp.eq.s32.totalorder %s15, 1
    %p54 = scmp.ne.s32.totalorder %s49, %s51
    %p55 = scmp.eq.s32.totalorder %s15, 0
    %p56 = por %p54, %p55
    %p57 = scmp.ne.s32.totalorder %s49, %s51
    %p58 = scmp.eq.s32.totalorder %s20, 1
    %p59 = por %p57, %p58
    %p60 = scmp.ne.s32.totalorder %s51, %s52
    %p61 = scmp.eq.s32.totalorder %s20, 0
    %p62 = por %p60, %p61
    %p63 = scmp.ne.s32.totalorder %s51, %s52
    %p64 = scmp.eq.s32.totalorder %s21, 1
    %p65 = por %p63, %p64
    %p67 = scmp.ne.s32.totalorder %s52, %s66
    %p68 = scmp.eq.s32.totalorder %s21, 0
    %p69 = por %p67, %p68
    %s71 = sadd.s32 %s70, 1
    %p74 = scmp.eq.s32.totalorder %s15, 1
    %p75 = scmp.ne.s32.totalorder %s70, %s72
    %p76 = scmp.eq.s32.totalorder %s15, 0
    %p77 = por %p75, %p76
    %p78 = scmp.ne.s32.totalorder %s70, %s72
    %p79 = scmp.eq.s32.totalorder %s20, 1
    %p80 = por %p78, %p79
    %p81 = scmp.ne.s32.totalorder %s72, %s73
    %p82 = scmp.eq.s32.totalorder %s20, 0
    %p83 = por %p81, %p82
    %p84 = scmp.ne.s32.totalorder %s72, %s73
    %p85 = scmp.eq.s32.totalorder %s21, 1
    %p86 = por %p84, %p85
    %p88 = scmp.ne.s32.totalorder %s73, %s87
    %p89 = scmp.eq.s32.totalorder %s21, 0
    %p90 = por %p88, %p89
    %s92 = sadd.s32 %s91, 1
    %p95 = scmp.eq.s32.totalorder %s15, 1
    %p96 = scmp.ne.s32.totalorder %s91, %s93
    %p97 = scmp.eq.s32.totalorder %s15, 0
    %p98 = por %p96, %p97
    %p99 = scmp.ne.s32.totalorder %s91, %s93
    %p100 = scmp.eq.s32.totalorder %s20, 1
    %p101 = por %p99, %p100
    %p102 = scmp.ne.s32.totalorder %s93, %s94
    %p103 = scmp.eq.s32.totalorder %s20, 0
    %p104 = por %p102, %p103
    %p105 = scmp.ne.s32.totalorder %s93, %s94
    %p106 = scmp.eq.s32.totalorder %s21, 1
    %p107 = por %p105, %p106
    %p109 = scmp.ne.s32.totalorder %s94, %s108
    %p110 = scmp.eq.s32.totalorder %s21, 0
    %p111 = por %p109, %p110
    %s113 = sadd.s32 %s112, 1
    %p116 = scmp.eq.s32.totalorder %s15, 1
    %p117 = scmp.ne.s32.totalorder %s112, %s114
    %p118 = scmp.eq.s32.totalorder %s15, 0
    %p119 = por %p117, %p118
    %p120 = scmp.ne.s32.totalorder %s112, %s114
    %p121 = scmp.eq.s32.totalorder %s20, 1
    %p122 = por %p120, %p121
    %p123 = scmp.ne.s32.totalorder %s114, %s115
    %p124 = scmp.eq.s32.totalorder %s20, 0
    %p125 = por %p123, %p124
    %p126 = scmp.ne.s32.totalorder %s114, %s115
    %p127 = scmp.eq.s32.totalorder %s21, 1
    %p128 = por %p126, %p127
    %p130 = scmp.ne.s32.totalorder %s115, %s129
    %p131 = scmp.eq.s32.totalorder %s21, 0
    %p132 = por %p130, %p131
    %s134 = sadd.s32 %s133, 1
    %p137 = scmp.eq.s32.totalorder %s15, 1
    %p138 = scmp.ne.s32.totalorder %s133, %s135
    %p139 = scmp.eq.s32.totalorder %s15, 0
    %p140 = por %p138, %p139
    %p141 = scmp.ne.s32.totalorder %s133, %s135
    %p142 = scmp.eq.s32.totalorder %s20, 1
    %p143 = por %p141, %p142
    %p144 = scmp.ne.s32.totalorder %s135, %s136
    %p145 = scmp.eq.s32.totalorder %s20, 0
    %p146 = por %p144, %p145
    %p147 = scmp.ne.s32.totalorder %s135, %s136
    %p148 = scmp.eq.s32.totalorder %s21, 1
    %p149 = por %p147, %p148
    %p151 = scmp.ne.s32.totalorder %s136, %s150
    %p152 = scmp.eq.s32.totalorder %s21, 0
    %p153 = por %p151, %p152
    %s155 = sadd.s32 %s154, 1
    %p158 = scmp.eq.s32.totalorder %s15, 1
    %p159 = scmp.ne.s32.totalorder %s154, %s156
    %p160 = scmp.eq.s32.totalorder %s15, 0
    %p161 = por %p159, %p160
    %p162 = scmp.ne.s32.totalorder %s154, %s156
    %p163 = scmp.eq.s32.totalorder %s20, 1
    %p164 = por %p162, %p163
    %p165 = scmp.ne.s32.totalorder %s156, %s157
    %p166 = scmp.eq.s32.totalorder %s20, 0
    %p167 = por %p165, %p166
    %p168 = scmp.ne.s32.totalorder %s156, %s157
    %p169 = scmp.eq.s32.totalorder %s21, 1
    %p170 = por %p168, %p169
    %p172 = scmp.ne.s32.totalorder %s157, %s171
    %p173 = scmp.eq.s32.totalorder %s21, 0
    %p174 = por %p172, %p173
    %s176 = sadd.s32 %s175, 1
    %p179 = scmp.eq.s32.totalorder %s15, 1
    %p180 = scmp.ne.s32.totalorder %s175, %s177
    %p181 = scmp.eq.s32.totalorder %s15, 0
    %p182 = por %p180, %p181
    %p183 = scmp.ne.s32.totalorder %s175, %s177
    %p184 = scmp.eq.s32.totalorder %s20, 1
    %p185 = por %p183, %p184
    %p186 = scmp.ne.s32.totalorder %s177, %s178
    %p187 = scmp.eq.s32.totalorder %s20, 0
    %p188 = por %p186, %p187
    %p189 = scmp.ne.s32.totalorder %s177, %s178
    %p190 = scmp.eq.s32.totalorder %s21, 1
    %p191 = por %p189, %p190
    %p193 = scmp.ne.s32.totalorder %s178, %s192
    %p194 = scmp.eq.s32.totalorder %s21, 0
    %p195 = por %p193, %p194
    %s197 = sadd.s32 %s196, 1
    %p200 = scmp.eq.s32.totalorder %s15, 1
    %p201 = scmp.ne.s32.totalorder %s196, %s198
    %p202 = scmp.eq.s32.totalorder %s15, 0
    %p203 = por %p201, %p202
    %p204 = scmp.ne.s32.totalorder %s196, %s198
    %p205 = scmp.eq.s32.totalorder %s20, 1
    %p206 = por %p204, %p205
    %p207 = scmp.ne.s32.totalorder %s198, %s199
    %p208 = scmp.eq.s32.totalorder %s20, 0
    %p209 = por %p207, %p208
    %p210 = scmp.ne.s32.totalorder %s198, %s199
    %p211 = scmp.eq.s32.totalorder %s21, 1
    %p212 = por %p210, %p211
    %p214 = scmp.ne.s32.totalorder %s199, %s213
    %p215 = scmp.eq.s32.totalorder %s21, 0
    %p216 = por %p214, %p215
    %s217 = ssub.s32 %s15, %s22
    %p218 = scmp.eq.s32.totalorder %s217, 0
    %s220 = sadd.s32 %s219, 1
    %s221 = scalar_select %p218, %s219, %s220
    %p224 = pneg %p218
    %p225 = scmp.eq.s32.totalorder %s15, 1
    %p226 = por %p224, %p225
    %p227 = scmp.ne.s32.totalorder %s219, %s222
    %p228 = scmp.eq.s32.totalorder %s15, 0
    %p229 = por %p227, %p228
    %p230 = scmp.ne.s32.totalorder %s219, %s222
    %p231 = scmp.eq.s32.totalorder %s20, 1
    %p232 = por %p230, %p231
    %p233 = scmp.ne.s32.totalorder %s222, %s223
    %p234 = scmp.eq.s32.totalorder %s20, 0
    %p235 = por %p233, %p234
    %p236 = scmp.ne.s32.totalorder %s222, %s223
    %p237 = scmp.eq.s32.totalorder %s21, 1
    %p238 = por %p236, %p237
    %p240 = scmp.ne.s32.totalorder %s223, %s239
    %p241 = scmp.eq.s32.totalorder %s21, 0
    %p242 = por %p240, %p241
    %p243 = scmp.le.s32.totalorder 1, %s15
    %p244 = scmp.lt.s32.totalorder %s15, 3
    %p245 = pnand %p243, %p244
    %p246 = pneg %p245
    // Predicated region
    $region9: #{basic_nn_forward.1} parent=5 // pred_check
      _
    $region10: #{basic_nn_forward.1} parent=5 // pred_check_branch
      %248 = sbr.rel (%p245) target = $region12
    $region11: #{basic_nn_forward.1} parent=5 // pred_region
      %s249 = ssub.s32 %s15, 1
      // Predicated region
      $region13: #{basic_nn_forward.1} parent=11 // pred_check
        %p250 = pneg %p62
      $region14: #{basic_nn_forward.1} parent=11 // pred_check_branch
        %252 = sbr.rel (%p250) target = $region16
      $region15: #{basic_nn_forward.1} parent=11 // pred_region
        _
      $region16: #{basic_nn_forward.1} parent=11 // pred_fallthru
        _
      // Predicated region
      $region17: #{basic_nn_forward.1} parent=11 // pred_check
        %p253 = pneg %p83
      $region18: #{basic_nn_forward.1} parent=11 // pred_check_branch
        %255 = sbr.rel (%p253) target = $region20
      $region19: #{basic_nn_forward.1} parent=11 // pred_region
        _
      $region20: #{basic_nn_forward.1} parent=11 // pred_fallthru
        _
      // Predicated region
      $region21: #{basic_nn_forward.1} parent=11 // pred_check
        %p256 = pneg %p104
      $region22: #{basic_nn_forward.1} parent=11 // pred_check_branch
        %258 = sbr.rel (%p256) target = $region24
      $region23: #{basic_nn_forward.1} parent=11 // pred_region
        _
      $region24: #{basic_nn_forward.1} parent=11 // pred_fallthru
        _
      // Predicated region
      $region25: #{basic_nn_forward.1} parent=11 // pred_check
        %p259 = pneg %p125
      $region26: #{basic_nn_forward.1} parent=11 // pred_check_branch
        %261 = sbr.rel (%p259) target = $region28
      $region27: #{basic_nn_forward.1} parent=11 // pred_region
        _
      $region28: #{basic_nn_forward.1} parent=11 // pred_fallthru
        _
      // Predicated region
      $region29: #{basic_nn_forward.1} parent=11 // pred_check
        %p262 = pneg %p146
      $region30: #{basic_nn_forward.1} parent=11 // pred_check_branch
        %264 = sbr.rel (%p262) target = $region32
      $region31: #{basic_nn_forward.1} parent=11 // pred_region
        _
      $region32: #{basic_nn_forward.1} parent=11 // pred_fallthru
        _
      // Predicated region
      $region33: #{basic_nn_forward.1} parent=11 // pred_check
        %p265 = pneg %p167
      $region34: #{basic_nn_forward.1} parent=11 // pred_check_branch
        %267 = sbr.rel (%p265) target = $region36
      $region35: #{basic_nn_forward.1} parent=11 // pred_region
        _
      $region36: #{basic_nn_forward.1} parent=11 // pred_fallthru
        _
      // Predicated region
      $region37: #{basic_nn_forward.1} parent=11 // pred_check
        %p268 = pneg %p188
      $region38: #{basic_nn_forward.1} parent=11 // pred_check_branch
        %270 = sbr.rel (%p268) target = $region40
      $region39: #{basic_nn_forward.1} parent=11 // pred_region
        _
      $region40: #{basic_nn_forward.1} parent=11 // pred_fallthru
        _
      // Predicated region
      $region41: #{basic_nn_forward.1} parent=11 // pred_check
        %p271 = pneg %p209
      $region42: #{basic_nn_forward.1} parent=11 // pred_check_branch
        %273 = sbr.rel (%p271) target = $region44
      $region43: #{basic_nn_forward.1} parent=11 // pred_region
        _
      $region44: #{basic_nn_forward.1} parent=11 // pred_fallthru
        _
    $region12: #{basic_nn_forward.1} parent=5 // pred_fallthru
      _
    %p274 = scmp.lt.s32.totalorder %s15, 2
    // Predicated region
    $region45: #{basic_nn_forward.1} parent=5 // pred_check
      %p275 = pneg %p274
    $region46: #{basic_nn_forward.1} parent=5 // pred_check_branch
      %277 = sbr.rel (%p275) target = $region48
    $region47: #{basic_nn_forward.1} parent=5 // pred_region
      // Predicated region
      $region49: #{basic_nn_forward.1} parent=47 // pred_check
        %p278 = pneg %p35
      $region50: #{basic_nn_forward.1} parent=47 // pred_check_branch
        %280 = sbr.rel (%p278) target = $region52
      $region51: #{basic_nn_forward.1} parent=47 // pred_region
        %s281 = smul.u32 64, %s15
        %p282 = scmp.lt.s32.totalorder %s281, 127
        %s283 = scalar_select %p282, %s281, 127
        %s284 = smul.addr %s283, 4
        %s285 = scalar_lea.vmem %s0, %s284
        %s286 = smul.u32 64, %s15
      $region52: #{basic_nn_forward.1} parent=47 // pred_fallthru
        _
    $region48: #{basic_nn_forward.1} parent=5 // pred_fallthru
      _
    %p287 = scmp.le.s32.totalorder 1, %s15
    %p288 = scmp.lt.s32.totalorder %s15, 3
    %p289 = pnand %p287, %p288
    %p290 = pneg %p289
    // Predicated region
    $region53: #{basic_nn_forward.1} parent=5 // pred_check
      _
    $region54: #{basic_nn_forward.1} parent=5 // pred_check_branch
      %292 = sbr.rel (%p289) target = $region56
    $region55: #{basic_nn_forward.1} parent=5 // pred_region
      %s293 = ssub.s32 %s15, 1
      %s294 = smul.u32 64, %s20
      %p295 = scmp.lt.s32.totalorder %s294, 127
      %s296 = scalar_select %p295, %s294, 127
      %s297 = smul.addr %s296, 4
      %s298 = scalar_lea.vmem %s0, %s297
      %p299 = pneg %p41
      %p300 = pneg %p38
      %p301 = pneg %p62
      %p302 = pneg %p59
      %p303 = pneg %p83
      %p304 = pneg %p80
      %p305 = pneg %p104
      %p306 = pneg %p101
      %p307 = pneg %p125
      %p308 = pneg %p122
      %p309 = pneg %p146
      %p310 = pneg %p143
      %p311 = pneg %p167
      %p312 = pneg %p164
      %p313 = pneg %p188
      %p314 = pneg %p185
      %p315 = pneg %p209
      %p316 = pneg %p206
      %p317 = pneg %p235
      %p318 = pneg %p232
      %s319 = smul.u32 64, %s20
      %p320 = scmp.lt.s32.totalorder %s319, 127
      %s321 = scalar_select %p320, %s319, 127
      %s322 = smul.addr %s321, 8
      %s323 = scalar_lea.vmem %s9, %s322
      %s324 = smul.u32 64, %s20
      %p325 = scmp.lt.s32.totalorder %s324, 127
      %s326 = scalar_select %p325, %s324, 127
      %s327 = smul.addr %s326, 4
      %s328 = scalar_lea.vmem %s0, %s327
      %s329 = smul.u32 64, %s20
      %s330 = smul.u32 64, %s20
      %p331 = scmp.lt.s32.totalorder %s330, 127
      %s332 = scalar_select %p331, %s330, 127
      %s333 = smul.addr %s332, 8
      %s334 = scalar_lea.vmem %s9, %s333
      %s335 = smul.u32 64, %s20
      %v337 = vld [vmem:[%s328] sm:$0xf]
      %v338 = vld [vmem:[%s328 + $0x4] sm:$0xf]
      %v339 = vld [vmem:[%s328 + $0x8] sm:$0xf]
      %v340 = vld [vmem:[%s328 + $0xc] sm:$0xf]
      %v341 = vld [vmem:[%s328 + $0x10] sm:$0xf]
      %v342 = vld [vmem:[%s328 + $0x14] sm:$0xf]
      %v343 = vld [vmem:[%s328 + $0x18] sm:$0xf]
      %v344 = vld [vmem:[%s328 + $0x1c] sm:$0xf]
      %v345 = vld [vmem:[%s328 + $0x20] sm:$0xf]
      %v346 = vld [vmem:[%s328 + $0x24] sm:$0xf]
      %v347 = vld [vmem:[%s328 + $0x28] sm:$0xf]
      %v348 = vld [vmem:[%s328 + $0x2c] sm:$0xf]
      %v349 = vld [vmem:[%s328 + $0x30] sm:$0xf]
      %v350 = vld [vmem:[%s328 + $0x34] sm:$0xf]
      %v351 = vld [vmem:[%s328 + $0x38] sm:$0xf]
      %v352 = vld [vmem:[%s328 + $0x3c] sm:$0xf]
      %v353 = vld [vmem:[%s328 + $0x40] sm:$0xf]
      %v354 = vld [vmem:[%s328 + $0x44] sm:$0xf]
      %v355 = vld [vmem:[%s328 + $0x48] sm:$0xf]
      %v356 = vld [vmem:[%s328 + $0x4c] sm:$0xf]
      %v357 = vld [vmem:[%s328 + $0x50] sm:$0xf]
      %v358 = vld [vmem:[%s328 + $0x54] sm:$0xf]
      %v359 = vld [vmem:[%s328 + $0x58] sm:$0xf]
      %v360 = vld [vmem:[%s328 + $0x5c] sm:$0xf]
      %v361 = vld [vmem:[%s328 + $0x60] sm:$0xf]
      %v362 = vld [vmem:[%s328 + $0x64] sm:$0xf]
      %v363 = vld [vmem:[%s328 + $0x68] sm:$0xf]
      %v364 = vld [vmem:[%s328 + $0x6c] sm:$0xf]
      %v365 = vld [vmem:[%s328 + $0x70] sm:$0xf]
      %v366 = vld [vmem:[%s328 + $0x74] sm:$0xf]
      %v367 = vld [vmem:[%s328 + $0x78] sm:$0xf]
      %v368 = vld [vmem:[%s328 + $0x7c] sm:$0xf]
      %v369 = vld [vmem:[%s328 + $0x80] sm:$0xf]
      %v370 = vld [vmem:[%s328 + $0x84] sm:$0xf]
      %v371 = vld [vmem:[%s328 + $0x88] sm:$0xf]
      %v372 = vld [vmem:[%s328 + $0x8c] sm:$0xf]
      %v373 = vld [vmem:[%s328 + $0x90] sm:$0xf]
      %v374 = vld [vmem:[%s328 + $0x94] sm:$0xf]
      %v375 = vld [vmem:[%s328 + $0x98] sm:$0xf]
      %v376 = vld [vmem:[%s328 + $0x9c] sm:$0xf]
      %v377 = vld [vmem:[%s328 + $0xa0] sm:$0xf]
      %v378 = vld [vmem:[%s328 + $0xa4] sm:$0xf]
      %v379 = vld [vmem:[%s328 + $0xa8] sm:$0xf]
      %v380 = vld [vmem:[%s328 + $0xac] sm:$0xf]
      %v381 = vld [vmem:[%s328 + $0xb0] sm:$0xf]
      %v382 = vld [vmem:[%s328 + $0xb4] sm:$0xf]
      %v383 = vld [vmem:[%s328 + $0xb8] sm:$0xf]
      %v384 = vld [vmem:[%s328 + $0xbc] sm:$0xf]
      %v385 = vld [vmem:[%s328 + $0xc0] sm:$0xf]
      %v386 = vld [vmem:[%s328 + $0xc4] sm:$0xf]
      %v387 = vld [vmem:[%s328 + $0xc8] sm:$0xf]
      %v388 = vld [vmem:[%s328 + $0xcc] sm:$0xf]
      %v389 = vld [vmem:[%s328 + $0xd0] sm:$0xf]
      %v390 = vld [vmem:[%s328 + $0xd4] sm:$0xf]
      %v391 = vld [vmem:[%s328 + $0xd8] sm:$0xf]
      %v392 = vld [vmem:[%s328 + $0xdc] sm:$0xf]
      %v393 = vld [vmem:[%s328 + $0xe0] sm:$0xf]
      %v394 = vld [vmem:[%s328 + $0xe4] sm:$0xf]
      %v395 = vld [vmem:[%s328 + $0xe8] sm:$0xf]
      %v396 = vld [vmem:[%s328 + $0xec] sm:$0xf]
      %v397 = vld [vmem:[%s328 + $0xf0] sm:$0xf]
      %v398 = vld [vmem:[%s328 + $0xf4] sm:$0xf]
      %v399 = vld [vmem:[%s328 + $0xf8] sm:$0xf]
      %v400 = vld [vmem:[%s328 + $0xfc] sm:$0xf]
      %v401 = vld [vmem:[%s1] sm:$0xf]
      %v402 = vld [vmem:[%s1 + $0x4] sm:$0xf]
      %v403 = vld [vmem:[%s2] sm:$0x1]
      %v405 = vperm.slane %v403, 0
      %v471 = vunpack.c.l.b16 %v337
      %v472 = vunpack.c.l.b16 %v338
      %v473 = vunpack.c.l.b16 %v339
      %v474 = vunpack.c.l.b16 %v340
      %v475 = vunpack.c.l.b16 %v341
      %v476 = vunpack.c.l.b16 %v342
      %v477 = vunpack.c.l.b16 %v343
      %v478 = vunpack.c.l.b16 %v344
      %v479 = vunpack.c.l.b16 %v345
      %v480 = vunpack.c.l.b16 %v346
      %v481 = vunpack.c.l.b16 %v347
      %v482 = vunpack.c.l.b16 %v348
      %v483 = vunpack.c.l.b16 %v349
      %v484 = vunpack.c.l.b16 %v350
      %v485 = vunpack.c.l.b16 %v351
      %v486 = vunpack.c.l.b16 %v352
      %v487 = vunpack.c.l.b16 %v353
      %v488 = vunpack.c.l.b16 %v354
      %v489 = vunpack.c.l.b16 %v355
      %v490 = vunpack.c.l.b16 %v356
      %v491 = vunpack.c.l.b16 %v357
      %v492 = vunpack.c.l.b16 %v358
      %v493 = vunpack.c.l.b16 %v359
      %v494 = vunpack.c.l.b16 %v360
      %v495 = vunpack.c.l.b16 %v361
      %v496 = vunpack.c.l.b16 %v362
      %v497 = vunpack.c.l.b16 %v363
      %v498 = vunpack.c.l.b16 %v364
      %v499 = vunpack.c.l.b16 %v365
      %v500 = vunpack.c.l.b16 %v366
      %v501 = vunpack.c.l.b16 %v367
      %v502 = vunpack.c.l.b16 %v368
      %v503 = vunpack.c.l.b16 %v369
      %v504 = vunpack.c.l.b16 %v370
      %v505 = vunpack.c.l.b16 %v371
      %v506 = vunpack.c.l.b16 %v372
      %v507 = vunpack.c.l.b16 %v373
      %v508 = vunpack.c.l.b16 %v374
      %v509 = vunpack.c.l.b16 %v375
      %v510 = vunpack.c.l.b16 %v376
      %v511 = vunpack.c.l.b16 %v377
      %v512 = vunpack.c.l.b16 %v378
      %v513 = vunpack.c.l.b16 %v379
      %v514 = vunpack.c.l.b16 %v380
      %v515 = vunpack.c.l.b16 %v381
      %v516 = vunpack.c.l.b16 %v382
      %v517 = vunpack.c.l.b16 %v383
      %v518 = vunpack.c.l.b16 %v384
      %v519 = vunpack.c.l.b16 %v385
      %v520 = vunpack.c.l.b16 %v386
      %v521 = vunpack.c.l.b16 %v387
      %v522 = vunpack.c.l.b16 %v388
      %v523 = vunpack.c.l.b16 %v389
      %v524 = vunpack.c.l.b16 %v390
      %v525 = vunpack.c.l.b16 %v391
      %v526 = vunpack.c.l.b16 %v392
      %v527 = vunpack.c.l.b16 %v393
      %v528 = vunpack.c.l.b16 %v394
      %v529 = vunpack.c.l.b16 %v395
      %v530 = vunpack.c.l.b16 %v396
      %v531 = vunpack.c.l.b16 %v397
      %v532 = vunpack.c.l.b16 %v398
      %v533 = vunpack.c.l.b16 %v399
      %v534 = vunpack.c.l.b16 %v400
      %v535 = vpack.c.b16 %v472, %v471
      %v536 = vpack.c.b16 %v474, %v473
      %v537 = vpack.c.b16 %v476, %v475
      %v538 = vpack.c.b16 %v478, %v477
      %v539 = vpack.c.b16 %v480, %v479
      %v540 = vpack.c.b16 %v482, %v481
      %v541 = vpack.c.b16 %v484, %v483
      %v542 = vpack.c.b16 %v486, %v485
      %v543 = vpack.c.b16 %v488, %v487
      %v544 = vpack.c.b16 %v490, %v489
      %v545 = vpack.c.b16 %v492, %v491
      %v546 = vpack.c.b16 %v494, %v493
      %v547 = vpack.c.b16 %v496, %v495
      %v548 = vpack.c.b16 %v498, %v497
      %v549 = vpack.c.b16 %v500, %v499
      %v550 = vpack.c.b16 %v502, %v501
      %v551 = vpack.c.b16 %v504, %v503
      %v552 = vpack.c.b16 %v506, %v505
      %v553 = vpack.c.b16 %v508, %v507
      %v554 = vpack.c.b16 %v510, %v509
      %v555 = vpack.c.b16 %v512, %v511
      %v556 = vpack.c.b16 %v514, %v513
      %v557 = vpack.c.b16 %v516, %v515
      %v558 = vpack.c.b16 %v518, %v517
      %v559 = vpack.c.b16 %v520, %v519
      %v560 = vpack.c.b16 %v522, %v521
      %v561 = vpack.c.b16 %v524, %v523
      %v562 = vpack.c.b16 %v526, %v525
      %v563 = vpack.c.b16 %v528, %v527
      %v564 = vpack.c.b16 %v530, %v529
      %v565 = vpack.c.b16 %v532, %v531
      %v566 = vpack.c.b16 %v534, %v533
      %v569 = vunpack.c.l.b16 %v401
      %v570 = vunpack.c.l.b16 %v402
      %v571 = vpack.c.b16 %v570, %v569
      %vm573 = vcmask 130048
      %v575 = vsel %vm573, %v535, 0
      %v578 = vsel %vm573, %v536, 0
      %v581 = vsel %vm573, %v537, 0
      %v584 = vsel %vm573, %v538, 0
      %v587 = vsel %vm573, %v539, 0
      %v590 = vsel %vm573, %v540, 0
      %v593 = vsel %vm573, %v541, 0
      %v596 = vsel %vm573, %v542, 0
      %v599 = vsel %vm573, %v543, 0
      %v602 = vsel %vm573, %v544, 0
      %v605 = vsel %vm573, %v545, 0
      %v608 = vsel %vm573, %v546, 0
      %v611 = vsel %vm573, %v547, 0
      %v614 = vsel %vm573, %v548, 0
      %v617 = vsel %vm573, %v549, 0
      %v620 = vsel %vm573, %v550, 0
      %v623 = vsel %vm573, %v551, 0
      %v626 = vsel %vm573, %v552, 0
      %v629 = vsel %vm573, %v553, 0
      %v632 = vsel %vm573, %v554, 0
      %v635 = vsel %vm573, %v555, 0
      %v638 = vsel %vm573, %v556, 0
      %v641 = vsel %vm573, %v557, 0
      %v644 = vsel %vm573, %v558, 0
      %v647 = vsel %vm573, %v559, 0
      %v650 = vsel %vm573, %v560, 0
      %v653 = vsel %vm573, %v561, 0
      %v656 = vsel %vm573, %v562, 0
      %v659 = vsel %vm573, %v563, 0
      %v662 = vsel %vm573, %v564, 0
      %v665 = vsel %vm573, %v565, 0
      %v668 = vsel %vm573, %v566, 0
      %670 = vmatpush.bf16.msra.mxu0 0
      %671 = vmatpush.bf16.msra.mxu0 0
      %672 = vmatpush.bf16.msra.mxu0 0
      %673 = vmatpush.bf16.msra.mxu0 0
      %674 = vmatpush.bf16.msra.mxu0 0
      %675 = vmatpush.bf16.msra.mxu0 0
      %676 = vmatpush.bf16.msra.mxu0 0
      %677 = vmatpush.bf16.msra.mxu0 %v571
      %678 = vmatmul.bf16.gmra.mxu0 %v575
      %v679 = vpop.f32.mrf.mxu0
      %v680 = vadd.f32 %v405, %v679
      %v681 = vpop.f32.mrf.mxu0
      %v682 = vadd.f32 %v405, %v681
      %683 = vmatmul.bf16.gmra.mxu0 %v578
      %v684 = vpop.f32.mrf.mxu0
      %v685 = vadd.f32 %v405, %v684
      %v686 = vpop.f32.mrf.mxu0
      %v687 = vadd.f32 %v405, %v686
      %688 = vmatmul.bf16.gmra.mxu0 %v581
      %v689 = vpop.f32.mrf.mxu0
      %v690 = vadd.f32 %v405, %v689
      %v691 = vpop.f32.mrf.mxu0
      %v692 = vadd.f32 %v405, %v691
      %693 = vmatmul.bf16.gmra.mxu0 %v584
      %v694 = vpop.f32.mrf.mxu0
      %v695 = vadd.f32 %v405, %v694
      %v696 = vpop.f32.mrf.mxu0
      %v697 = vadd.f32 %v405, %v696
      %698 = vmatmul.bf16.gmra.mxu0 %v587
      %v699 = vpop.f32.mrf.mxu0
      %v700 = vadd.f32 %v405, %v699
      %v701 = vpop.f32.mrf.mxu0
      %v702 = vadd.f32 %v405, %v701
      %703 = vmatmul.bf16.gmra.mxu0 %v590
      %v704 = vpop.f32.mrf.mxu0
      %v705 = vadd.f32 %v405, %v704
      %v706 = vpop.f32.mrf.mxu0
      %v707 = vadd.f32 %v405, %v706
      %708 = vmatmul.bf16.gmra.mxu0 %v593
      %v709 = vpop.f32.mrf.mxu0
      %v710 = vadd.f32 %v405, %v709
      %v711 = vpop.f32.mrf.mxu0
      %v712 = vadd.f32 %v405, %v711
      %713 = vmatmul.bf16.gmra.mxu0 %v596
      %v714 = vpop.f32.mrf.mxu0
      %v715 = vadd.f32 %v405, %v714
      %v716 = vpop.f32.mrf.mxu0
      %v717 = vadd.f32 %v405, %v716
      %718 = vmatmul.bf16.gmra.mxu0 %v599
      %v719 = vpop.f32.mrf.mxu0
      %v720 = vadd.f32 %v405, %v719
      %v721 = vpop.f32.mrf.mxu0
      %v722 = vadd.f32 %v405, %v721
      %723 = vmatmul.bf16.gmra.mxu0 %v602
      %v724 = vpop.f32.mrf.mxu0
      %v725 = vadd.f32 %v405, %v724
      %v726 = vpop.f32.mrf.mxu0
      %v727 = vadd.f32 %v405, %v726
      %728 = vmatmul.bf16.gmra.mxu0 %v605
      %v729 = vpop.f32.mrf.mxu0
      %v730 = vadd.f32 %v405, %v729
      %v731 = vpop.f32.mrf.mxu0
      %v732 = vadd.f32 %v405, %v731
      %733 = vmatmul.bf16.gmra.mxu0 %v608
      %v734 = vpop.f32.mrf.mxu0
      %v735 = vadd.f32 %v405, %v734
      %v736 = vpop.f32.mrf.mxu0
      %v737 = vadd.f32 %v405, %v736
      %738 = vmatmul.bf16.gmra.mxu0 %v611
      %v739 = vpop.f32.mrf.mxu0
      %v740 = vadd.f32 %v405, %v739
      %v741 = vpop.f32.mrf.mxu0
      %v742 = vadd.f32 %v405, %v741
      %743 = vmatmul.bf16.gmra.mxu0 %v614
      %v744 = vpop.f32.mrf.mxu0
      %v745 = vadd.f32 %v405, %v744
      %v746 = vpop.f32.mrf.mxu0
      %v747 = vadd.f32 %v405, %v746
      %748 = vmatmul.bf16.gmra.mxu0 %v617
      %v749 = vpop.f32.mrf.mxu0
      %v750 = vadd.f32 %v405, %v749
      %v751 = vpop.f32.mrf.mxu0
      %v752 = vadd.f32 %v405, %v751
      %753 = vmatmul.bf16.gmra.mxu0 %v620
      %v754 = vpop.f32.mrf.mxu0
      %v755 = vadd.f32 %v405, %v754
      %v756 = vpop.f32.mrf.mxu0
      %v757 = vadd.f32 %v405, %v756
      %758 = vmatmul.bf16.gmra.mxu0 %v623
      %v759 = vpop.f32.mrf.mxu0
      %v760 = vadd.f32 %v405, %v759
      %v761 = vpop.f32.mrf.mxu0
      %v762 = vadd.f32 %v405, %v761
      %763 = vmatmul.bf16.gmra.mxu0 %v626
      %v764 = vpop.f32.mrf.mxu0
      %v765 = vadd.f32 %v405, %v764
      %v766 = vpop.f32.mrf.mxu0
      %v767 = vadd.f32 %v405, %v766
      %768 = vmatmul.bf16.gmra.mxu0 %v629
      %v769 = vpop.f32.mrf.mxu0
      %v770 = vadd.f32 %v405, %v769
      %v771 = vpop.f32.mrf.mxu0
      %v772 = vadd.f32 %v405, %v771
      %773 = vmatmul.bf16.gmra.mxu0 %v632
      %v774 = vpop.f32.mrf.mxu0
      %v775 = vadd.f32 %v405, %v774
      %v776 = vpop.f32.mrf.mxu0
      %v777 = vadd.f32 %v405, %v776
      %778 = vmatmul.bf16.gmra.mxu0 %v635
      %v779 = vpop.f32.mrf.mxu0
      %v780 = vadd.f32 %v405, %v779
      %v781 = vpop.f32.mrf.mxu0
      %v782 = vadd.f32 %v405, %v781
      %783 = vmatmul.bf16.gmra.mxu0 %v638
      %v784 = vpop.f32.mrf.mxu0
      %v785 = vadd.f32 %v405, %v784
      %v786 = vpop.f32.mrf.mxu0
      %v787 = vadd.f32 %v405, %v786
      %788 = vmatmul.bf16.gmra.mxu0 %v641
      %v789 = vpop.f32.mrf.mxu0
      %v790 = vadd.f32 %v405, %v789
      %v791 = vpop.f32.mrf.mxu0
      %v792 = vadd.f32 %v405, %v791
      %793 = vmatmul.bf16.gmra.mxu0 %v644
      %v794 = vpop.f32.mrf.mxu0
      %v795 = vadd.f32 %v405, %v794
      %v796 = vpop.f32.mrf.mxu0
      %v797 = vadd.f32 %v405, %v796
      %798 = vmatmul.bf16.gmra.mxu0 %v647
      %v799 = vpop.f32.mrf.mxu0
      %v800 = vadd.f32 %v405, %v799
      %v801 = vpop.f32.mrf.mxu0
      %v802 = vadd.f32 %v405, %v801
      %803 = vmatmul.bf16.gmra.mxu0 %v650
      %v804 = vpop.f32.mrf.mxu0
      %v805 = vadd.f32 %v405, %v804
      %v806 = vpop.f32.mrf.mxu0
      %v807 = vadd.f32 %v405, %v806
      %808 = vmatmul.bf16.gmra.mxu0 %v653
      %v809 = vpop.f32.mrf.mxu0
      %v810 = vadd.f32 %v405, %v809
      %v811 = vpop.f32.mrf.mxu0
      %v812 = vadd.f32 %v405, %v811
      %813 = vmatmul.bf16.gmra.mxu0 %v656
      %v814 = vpop.f32.mrf.mxu0
      %v815 = vadd.f32 %v405, %v814
      %v816 = vpop.f32.mrf.mxu0
      %v817 = vadd.f32 %v405, %v816
      %818 = vmatmul.bf16.gmra.mxu0 %v659
      %v819 = vpop.f32.mrf.mxu0
      %v820 = vadd.f32 %v405, %v819
      %v821 = vpop.f32.mrf.mxu0
      %v822 = vadd.f32 %v405, %v821
      %823 = vmatmul.bf16.gmra.mxu0 %v662
      %v824 = vpop.f32.mrf.mxu0
      %v825 = vadd.f32 %v405, %v824
      %v826 = vpop.f32.mrf.mxu0
      %v827 = vadd.f32 %v405, %v826
      %828 = vmatmul.bf16.gmra.mxu0 %v665
      %v829 = vpop.f32.mrf.mxu0
      %v830 = vadd.f32 %v405, %v829
      %v831 = vpop.f32.mrf.mxu0
      %v832 = vadd.f32 %v405, %v831
      %833 = vmatmul.bf16.gmra.mxu0 %v668
      %v834 = vpop.f32.mrf.mxu0
      %v835 = vadd.f32 %v405, %v834
      %v836 = vpop.f32.mrf.mxu0
      %v837 = vadd.f32 %v405, %v836
      %838 = vdwg.mxu0
      %v839 = vmax.f32 %v680, 0.0
      %v840 = vmax.f32 %v682, 0.0
      %v841 = vmax.f32 %v685, 0.0
      %v842 = vmax.f32 %v687, 0.0
      %v843 = vmax.f32 %v690, 0.0
      %v844 = vmax.f32 %v692, 0.0
      %v845 = vmax.f32 %v695, 0.0
      %v846 = vmax.f32 %v697, 0.0
      %v847 = vmax.f32 %v700, 0.0
      %v848 = vmax.f32 %v702, 0.0
      %v849 = vmax.f32 %v705, 0.0
      %v850 = vmax.f32 %v707, 0.0
      %v851 = vmax.f32 %v710, 0.0
      %v852 = vmax.f32 %v712, 0.0
      %v853 = vmax.f32 %v715, 0.0
      %v854 = vmax.f32 %v717, 0.0
      %v855 = vmax.f32 %v720, 0.0
      %v856 = vmax.f32 %v722, 0.0
      %v857 = vmax.f32 %v725, 0.0
      %v858 = vmax.f32 %v727, 0.0
      %v859 = vmax.f32 %v730, 0.0
      %v860 = vmax.f32 %v732, 0.0
      %v861 = vmax.f32 %v735, 0.0
      %v862 = vmax.f32 %v737, 0.0
      %v863 = vmax.f32 %v740, 0.0
      %v864 = vmax.f32 %v742, 0.0
      %v865 = vmax.f32 %v745, 0.0
      %v866 = vmax.f32 %v747, 0.0
      %v867 = vmax.f32 %v750, 0.0
      %v868 = vmax.f32 %v752, 0.0
      %v869 = vmax.f32 %v755, 0.0
      %v870 = vmax.f32 %v757, 0.0
      %v871 = vmax.f32 %v760, 0.0
      %v872 = vmax.f32 %v762, 0.0
      %v873 = vmax.f32 %v765, 0.0
      %v874 = vmax.f32 %v767, 0.0
      %v875 = vmax.f32 %v770, 0.0
      %v876 = vmax.f32 %v772, 0.0
      %v877 = vmax.f32 %v775, 0.0
      %v878 = vmax.f32 %v777, 0.0
      %v879 = vmax.f32 %v780, 0.0
      %v880 = vmax.f32 %v782, 0.0
      %v881 = vmax.f32 %v785, 0.0
      %v882 = vmax.f32 %v787, 0.0
      %v883 = vmax.f32 %v790, 0.0
      %v884 = vmax.f32 %v792, 0.0
      %v885 = vmax.f32 %v795, 0.0
      %v886 = vmax.f32 %v797, 0.0
      %v887 = vmax.f32 %v800, 0.0
      %v888 = vmax.f32 %v802, 0.0
      %v889 = vmax.f32 %v805, 0.0
      %v890 = vmax.f32 %v807, 0.0
      %v891 = vmax.f32 %v810, 0.0
      %v892 = vmax.f32 %v812, 0.0
      %v893 = vmax.f32 %v815, 0.0
      %v894 = vmax.f32 %v817, 0.0
      %v895 = vmax.f32 %v820, 0.0
      %v896 = vmax.f32 %v822, 0.0
      %v897 = vmax.f32 %v825, 0.0
      %v898 = vmax.f32 %v827, 0.0
      %v899 = vmax.f32 %v830, 0.0
      %v900 = vmax.f32 %v832, 0.0
      %v901 = vmax.f32 %v835, 0.0
      %v902 = vmax.f32 %v837, 0.0
      %v903 = vpack.c.bf16 %v840, %v839
      %v904 = vpack.c.bf16 %v842, %v841
      %v905 = vpack.c.bf16 %v844, %v843
      %v906 = vpack.c.bf16 %v846, %v845
      %v907 = vpack.c.bf16 %v848, %v847
      %v908 = vpack.c.bf16 %v850, %v849
      %v909 = vpack.c.bf16 %v852, %v851
      %v910 = vpack.c.bf16 %v854, %v853
      %v911 = vpack.c.bf16 %v856, %v855
      %v912 = vpack.c.bf16 %v858, %v857
      %v913 = vpack.c.bf16 %v860, %v859
      %v914 = vpack.c.bf16 %v862, %v861
      %v915 = vpack.c.bf16 %v864, %v863
      %v916 = vpack.c.bf16 %v866, %v865
      %v917 = vpack.c.bf16 %v868, %v867
      %v918 = vpack.c.bf16 %v870, %v869
      %v919 = vpack.c.bf16 %v872, %v871
      %v920 = vpack.c.bf16 %v874, %v873
      %v921 = vpack.c.bf16 %v876, %v875
      %v922 = vpack.c.bf16 %v878, %v877
      %v923 = vpack.c.bf16 %v880, %v879
      %v924 = vpack.c.bf16 %v882, %v881
      %v925 = vpack.c.bf16 %v884, %v883
      %v926 = vpack.c.bf16 %v886, %v885
      %v927 = vpack.c.bf16 %v888, %v887
      %v928 = vpack.c.bf16 %v890, %v889
      %v929 = vpack.c.bf16 %v892, %v891
      %v930 = vpack.c.bf16 %v894, %v893
      %v931 = vpack.c.bf16 %v896, %v895
      %v932 = vpack.c.bf16 %v898, %v897
      %v933 = vpack.c.bf16 %v900, %v899
      %v934 = vpack.c.bf16 %v902, %v901
      %v935 = vld [vmem:[%s3] sm:$0xf]
      %v936 = vld [vmem:[%s3 + $0x4] sm:$0xf]
      %v937 = vld [vmem:[%s3 + $0x8] sm:$0xf]
      %v938 = vld [vmem:[%s3 + $0xc] sm:$0xf]
      %v939 = vld [vmem:[%s3 + $0x10] sm:$0xf]
      %v940 = vld [vmem:[%s3 + $0x14] sm:$0xf]
      %v941 = vld [vmem:[%s3 + $0x18] sm:$0xf]
      %v942 = vld [vmem:[%s3 + $0x1c] sm:$0xf]
      %v943 = vld [vmem:[%s3 + $0x20] sm:$0xf]
      %v944 = vld [vmem:[%s3 + $0x24] sm:$0xf]
      %v945 = vld [vmem:[%s3 + $0x28] sm:$0xf]
      %v946 = vld [vmem:[%s3 + $0x2c] sm:$0xf]
      %v947 = vld [vmem:[%s3 + $0x30] sm:$0xf]
      %v948 = vld [vmem:[%s3 + $0x34] sm:$0xf]
      %v949 = vld [vmem:[%s3 + $0x38] sm:$0xf]
      %v950 = vld [vmem:[%s3 + $0x3c] sm:$0xf]
      %v951 = vld [vmem:[%s4] sm:$0x1]
      %v953 = vperm.slane %v951, 0
      %v971 = vunpack.c.l.b16 %v935
      %v972 = vunpack.c.l.b16 %v936
      %v973 = vunpack.c.l.b16 %v937
      %v974 = vunpack.c.l.b16 %v938
      %v975 = vunpack.c.l.b16 %v939
      %v976 = vunpack.c.l.b16 %v940
      %v977 = vunpack.c.l.b16 %v941
      %v978 = vunpack.c.l.b16 %v942
      %v979 = vunpack.c.l.b16 %v943
      %v980 = vunpack.c.l.b16 %v944
      %v981 = vunpack.c.l.b16 %v945
      %v982 = vunpack.c.l.b16 %v946
      %v983 = vunpack.c.l.b16 %v947
      %v984 = vunpack.c.l.b16 %v948
      %v985 = vunpack.c.l.b16 %v949
      %v986 = vunpack.c.l.b16 %v950
      %v987 = vpack.c.b16 %v972, %v971
      %v988 = vpack.c.b16 %v974, %v973
      %v989 = vpack.c.b16 %v976, %v975
      %v990 = vpack.c.b16 %v978, %v977
      %v991 = vpack.c.b16 %v980, %v979
      %v992 = vpack.c.b16 %v982, %v981
      %v993 = vpack.c.b16 %v984, %v983
      %v994 = vpack.c.b16 %v986, %v985
      %1003 = vmatpush.bf16.msra.mxu0 %v994
      %1004 = vmatpush.bf16.msra.mxu0 %v993
      %1005 = vmatpush.bf16.msra.mxu0 %v992
      %1006 = vmatpush.bf16.msra.mxu0 %v991
      %1007 = vmatpush.bf16.msra.mxu0 %v990
      %1008 = vmatpush.bf16.msra.mxu0 %v989
      %1009 = vmatpush.bf16.msra.mxu0 %v988
      %1010 = vmatpush.bf16.msra.mxu0 %v987
      %1011 = vmatmul.bf16.gmra.mxu0 %v903
      %v1012 = vpop.f32.mrf.mxu0
      %v1013 = vadd.f32 %v953, %v1012
      %v1014 = vpop.f32.mrf.mxu0
      %v1015 = vadd.f32 %v953, %v1014
      %1016 = vmatmul.bf16.gmra.mxu0 %v904
      %v1017 = vpop.f32.mrf.mxu0
      %v1018 = vadd.f32 %v953, %v1017
      %v1019 = vpop.f32.mrf.mxu0
      %v1020 = vadd.f32 %v953, %v1019
      %1021 = vmatmul.bf16.gmra.mxu0 %v905
      %v1022 = vpop.f32.mrf.mxu0
      %v1023 = vadd.f32 %v953, %v1022
      %v1024 = vpop.f32.mrf.mxu0
      %v1025 = vadd.f32 %v953, %v1024
      %1026 = vmatmul.bf16.gmra.mxu0 %v906
      %v1027 = vpop.f32.mrf.mxu0
      %v1028 = vadd.f32 %v953, %v1027
      %v1029 = vpop.f32.mrf.mxu0
      %v1030 = vadd.f32 %v953, %v1029
      %1031 = vmatmul.bf16.gmra.mxu0 %v907
      %v1032 = vpop.f32.mrf.mxu0
      %v1033 = vadd.f32 %v953, %v1032
      %v1034 = vpop.f32.mrf.mxu0
      %v1035 = vadd.f32 %v953, %v1034
      %1036 = vmatmul.bf16.gmra.mxu0 %v908
      %v1037 = vpop.f32.mrf.mxu0
      %v1038 = vadd.f32 %v953, %v1037
      %v1039 = vpop.f32.mrf.mxu0
      %v1040 = vadd.f32 %v953, %v1039
      %1041 = vmatmul.bf16.gmra.mxu0 %v909
      %v1042 = vpop.f32.mrf.mxu0
      %v1043 = vadd.f32 %v953, %v1042
      %v1044 = vpop.f32.mrf.mxu0
      %v1045 = vadd.f32 %v953, %v1044
      %1046 = vmatmul.bf16.gmra.mxu0 %v910
      %v1047 = vpop.f32.mrf.mxu0
      %v1048 = vadd.f32 %v953, %v1047
      %v1049 = vpop.f32.mrf.mxu0
      %v1050 = vadd.f32 %v953, %v1049
      %1051 = vmatmul.bf16.gmra.mxu0 %v911
      %v1052 = vpop.f32.mrf.mxu0
      %v1053 = vadd.f32 %v953, %v1052
      %v1054 = vpop.f32.mrf.mxu0
      %v1055 = vadd.f32 %v953, %v1054
      %1056 = vmatmul.bf16.gmra.mxu0 %v912
      %v1057 = vpop.f32.mrf.mxu0
      %v1058 = vadd.f32 %v953, %v1057
      %v1059 = vpop.f32.mrf.mxu0
      %v1060 = vadd.f32 %v953, %v1059
      %1061 = vmatmul.bf16.gmra.mxu0 %v913
      %v1062 = vpop.f32.mrf.mxu0
      %v1063 = vadd.f32 %v953, %v1062
      %v1064 = vpop.f32.mrf.mxu0
      %v1065 = vadd.f32 %v953, %v1064
      %1066 = vmatmul.bf16.gmra.mxu0 %v914
      %v1067 = vpop.f32.mrf.mxu0
      %v1068 = vadd.f32 %v953, %v1067
      %v1069 = vpop.f32.mrf.mxu0
      %v1070 = vadd.f32 %v953, %v1069
      %1071 = vmatmul.bf16.gmra.mxu0 %v915
      %v1072 = vpop.f32.mrf.mxu0
      %v1073 = vadd.f32 %v953, %v1072
      %v1074 = vpop.f32.mrf.mxu0
      %v1075 = vadd.f32 %v953, %v1074
      %1076 = vmatmul.bf16.gmra.mxu0 %v916
      %v1077 = vpop.f32.mrf.mxu0
      %v1078 = vadd.f32 %v953, %v1077
      %v1079 = vpop.f32.mrf.mxu0
      %v1080 = vadd.f32 %v953, %v1079
      %1081 = vmatmul.bf16.gmra.mxu0 %v917
      %v1082 = vpop.f32.mrf.mxu0
      %v1083 = vadd.f32 %v953, %v1082
      %v1084 = vpop.f32.mrf.mxu0
      %v1085 = vadd.f32 %v953, %v1084
      %1086 = vmatmul.bf16.gmra.mxu0 %v918
      %v1087 = vpop.f32.mrf.mxu0
      %v1088 = vadd.f32 %v953, %v1087
      %v1089 = vpop.f32.mrf.mxu0
      %v1090 = vadd.f32 %v953, %v1089
      %1091 = vmatmul.bf16.gmra.mxu0 %v919
      %v1092 = vpop.f32.mrf.mxu0
      %v1093 = vadd.f32 %v953, %v1092
      %v1094 = vpop.f32.mrf.mxu0
      %v1095 = vadd.f32 %v953, %v1094
      %1096 = vmatmul.bf16.gmra.mxu0 %v920
      %v1097 = vpop.f32.mrf.mxu0
      %v1098 = vadd.f32 %v953, %v1097
      %v1099 = vpop.f32.mrf.mxu0
      %v1100 = vadd.f32 %v953, %v1099
      %1101 = vmatmul.bf16.gmra.mxu0 %v921
      %v1102 = vpop.f32.mrf.mxu0
      %v1103 = vadd.f32 %v953, %v1102
      %v1104 = vpop.f32.mrf.mxu0
      %v1105 = vadd.f32 %v953, %v1104
      %1106 = vmatmul.bf16.gmra.mxu0 %v922
      %v1107 = vpop.f32.mrf.mxu0
      %v1108 = vadd.f32 %v953, %v1107
      %v1109 = vpop.f32.mrf.mxu0
      %v1110 = vadd.f32 %v953, %v1109
      %1111 = vmatmul.bf16.gmra.mxu0 %v923
      %v1112 = vpop.f32.mrf.mxu0
      %v1113 = vadd.f32 %v953, %v1112
      %v1114 = vpop.f32.mrf.mxu0
      %v1115 = vadd.f32 %v953, %v1114
      %1116 = vmatmul.bf16.gmra.mxu0 %v924
      %v1117 = vpop.f32.mrf.mxu0
      %v1118 = vadd.f32 %v953, %v1117
      %v1119 = vpop.f32.mrf.mxu0
      %v1120 = vadd.f32 %v953, %v1119
      %1121 = vmatmul.bf16.gmra.mxu0 %v925
      %v1122 = vpop.f32.mrf.mxu0
      %v1123 = vadd.f32 %v953, %v1122
      %v1124 = vpop.f32.mrf.mxu0
      %v1125 = vadd.f32 %v953, %v1124
      %1126 = vmatmul.bf16.gmra.mxu0 %v926
      %v1127 = vpop.f32.mrf.mxu0
      %v1128 = vadd.f32 %v953, %v1127
      %v1129 = vpop.f32.mrf.mxu0
      %v1130 = vadd.f32 %v953, %v1129
      %1131 = vmatmul.bf16.gmra.mxu0 %v927
      %v1132 = vpop.f32.mrf.mxu0
      %v1133 = vadd.f32 %v953, %v1132
      %v1134 = vpop.f32.mrf.mxu0
      %v1135 = vadd.f32 %v953, %v1134
      %1136 = vmatmul.bf16.gmra.mxu0 %v928
      %v1137 = vpop.f32.mrf.mxu0
      %v1138 = vadd.f32 %v953, %v1137
      %v1139 = vpop.f32.mrf.mxu0
      %v1140 = vadd.f32 %v953, %v1139
      %1141 = vmatmul.bf16.gmra.mxu0 %v929
      %v1142 = vpop.f32.mrf.mxu0
      %v1143 = vadd.f32 %v953, %v1142
      %v1144 = vpop.f32.mrf.mxu0
      %v1145 = vadd.f32 %v953, %v1144
      %1146 = vmatmul.bf16.gmra.mxu0 %v930
      %v1147 = vpop.f32.mrf.mxu0
      %v1148 = vadd.f32 %v953, %v1147
      %v1149 = vpop.f32.mrf.mxu0
      %v1150 = vadd.f32 %v953, %v1149
      %1151 = vmatmul.bf16.gmra.mxu0 %v931
      %v1152 = vpop.f32.mrf.mxu0
      %v1153 = vadd.f32 %v953, %v1152
      %v1154 = vpop.f32.mrf.mxu0
      %v1155 = vadd.f32 %v953, %v1154
      %1156 = vmatmul.bf16.gmra.mxu0 %v932
      %v1157 = vpop.f32.mrf.mxu0
      %v1158 = vadd.f32 %v953, %v1157
      %v1159 = vpop.f32.mrf.mxu0
      %v1160 = vadd.f32 %v953, %v1159
      %1161 = vmatmul.bf16.gmra.mxu0 %v933
      %v1162 = vpop.f32.mrf.mxu0
      %v1163 = vadd.f32 %v953, %v1162
      %v1164 = vpop.f32.mrf.mxu0
      %v1165 = vadd.f32 %v953, %v1164
      %1166 = vmatmul.bf16.gmra.mxu0 %v934
      %v1167 = vpop.f32.mrf.mxu0
      %v1168 = vadd.f32 %v953, %v1167
      %v1169 = vpop.f32.mrf.mxu0
      %v1170 = vadd.f32 %v953, %v1169
      %1171 = vdwg.mxu0
      %v1172 = vmax.f32 %v1013, 0.0
      %v1173 = vmax.f32 %v1015, 0.0
      %v1174 = vmax.f32 %v1018, 0.0
      %v1175 = vmax.f32 %v1020, 0.0
      %v1176 = vmax.f32 %v1023, 0.0
      %v1177 = vmax.f32 %v1025, 0.0
      %v1178 = vmax.f32 %v1028, 0.0
      %v1179 = vmax.f32 %v1030, 0.0
      %v1180 = vmax.f32 %v1033, 0.0
      %v1181 = vmax.f32 %v1035, 0.0
      %v1182 = vmax.f32 %v1038, 0.0
      %v1183 = vmax.f32 %v1040, 0.0
      %v1184 = vmax.f32 %v1043, 0.0
      %v1185 = vmax.f32 %v1045, 0.0
      %v1186 = vmax.f32 %v1048, 0.0
      %v1187 = vmax.f32 %v1050, 0.0
      %v1188 = vmax.f32 %v1053, 0.0
      %v1189 = vmax.f32 %v1055, 0.0
      %v1190 = vmax.f32 %v1058, 0.0
      %v1191 = vmax.f32 %v1060, 0.0
      %v1192 = vmax.f32 %v1063, 0.0
      %v1193 = vmax.f32 %v1065, 0.0
      %v1194 = vmax.f32 %v1068, 0.0
      %v1195 = vmax.f32 %v1070, 0.0
      %v1196 = vmax.f32 %v1073, 0.0
      %v1197 = vmax.f32 %v1075, 0.0
      %v1198 = vmax.f32 %v1078, 0.0
      %v1199 = vmax.f32 %v1080, 0.0
      %v1200 = vmax.f32 %v1083, 0.0
      %v1201 = vmax.f32 %v1085, 0.0
      %v1202 = vmax.f32 %v1088, 0.0
      %v1203 = vmax.f32 %v1090, 0.0
      %v1204 = vmax.f32 %v1093, 0.0
      %v1205 = vmax.f32 %v1095, 0.0
      %v1206 = vmax.f32 %v1098, 0.0
      %v1207 = vmax.f32 %v1100, 0.0
      %v1208 = vmax.f32 %v1103, 0.0
      %v1209 = vmax.f32 %v1105, 0.0
      %v1210 = vmax.f32 %v1108, 0.0
      %v1211 = vmax.f32 %v1110, 0.0
      %v1212 = vmax.f32 %v1113, 0.0
      %v1213 = vmax.f32 %v1115, 0.0
      %v1214 = vmax.f32 %v1118, 0.0
      %v1215 = vmax.f32 %v1120, 0.0
      %v1216 = vmax.f32 %v1123, 0.0
      %v1217 = vmax.f32 %v1125, 0.0
      %v1218 = vmax.f32 %v1128, 0.0
      %v1219 = vmax.f32 %v1130, 0.0
      %v1220 = vmax.f32 %v1133, 0.0
      %v1221 = vmax.f32 %v1135, 0.0
      %v1222 = vmax.f32 %v1138, 0.0
      %v1223 = vmax.f32 %v1140, 0.0
      %v1224 = vmax.f32 %v1143, 0.0
      %v1225 = vmax.f32 %v1145, 0.0
      %v1226 = vmax.f32 %v1148, 0.0
      %v1227 = vmax.f32 %v1150, 0.0
      %v1228 = vmax.f32 %v1153, 0.0
      %v1229 = vmax.f32 %v1155, 0.0
      %v1230 = vmax.f32 %v1158, 0.0
      %v1231 = vmax.f32 %v1160, 0.0
      %v1232 = vmax.f32 %v1163, 0.0
      %v1233 = vmax.f32 %v1165, 0.0
      %v1234 = vmax.f32 %v1168, 0.0
      %v1235 = vmax.f32 %v1170, 0.0
      %v1236 = vpack.c.bf16 %v1173, %v1172
      %v1237 = vpack.c.bf16 %v1175, %v1174
      %v1238 = vpack.c.bf16 %v1177, %v1176
      %v1239 = vpack.c.bf16 %v1179, %v1178
      %v1240 = vpack.c.bf16 %v1181, %v1180
      %v1241 = vpack.c.bf16 %v1183, %v1182
      %v1242 = vpack.c.bf16 %v1185, %v1184
      %v1243 = vpack.c.bf16 %v1187, %v1186
      %v1244 = vpack.c.bf16 %v1189, %v1188
      %v1245 = vpack.c.bf16 %v1191, %v1190
      %v1246 = vpack.c.bf16 %v1193, %v1192
      %v1247 = vpack.c.bf16 %v1195, %v1194
      %v1248 = vpack.c.bf16 %v1197, %v1196
      %v1249 = vpack.c.bf16 %v1199, %v1198
      %v1250 = vpack.c.bf16 %v1201, %v1200
      %v1251 = vpack.c.bf16 %v1203, %v1202
      %v1252 = vpack.c.bf16 %v1205, %v1204
      %v1253 = vpack.c.bf16 %v1207, %v1206
      %v1254 = vpack.c.bf16 %v1209, %v1208
      %v1255 = vpack.c.bf16 %v1211, %v1210
      %v1256 = vpack.c.bf16 %v1213, %v1212
      %v1257 = vpack.c.bf16 %v1215, %v1214
      %v1258 = vpack.c.bf16 %v1217, %v1216
      %v1259 = vpack.c.bf16 %v1219, %v1218
      %v1260 = vpack.c.bf16 %v1221, %v1220
      %v1261 = vpack.c.bf16 %v1223, %v1222
      %v1262 = vpack.c.bf16 %v1225, %v1224
      %v1263 = vpack.c.bf16 %v1227, %v1226
      %v1264 = vpack.c.bf16 %v1229, %v1228
      %v1265 = vpack.c.bf16 %v1231, %v1230
      %v1266 = vpack.c.bf16 %v1233, %v1232
      %v1267 = vpack.c.bf16 %v1235, %v1234
      %v1268 = vld [vmem:[%s5] sm:$0xf]
      %v1269 = vld [vmem:[%s5 + $0x4] sm:$0xf]
      %v1270 = vld [vmem:[%s5 + $0x8] sm:$0xf]
      %v1271 = vld [vmem:[%s5 + $0xc] sm:$0xf]
      %v1272 = vld [vmem:[%s5 + $0x10] sm:$0xf]
      %v1273 = vld [vmem:[%s5 + $0x14] sm:$0xf]
      %v1274 = vld [vmem:[%s5 + $0x18] sm:$0xf]
      %v1275 = vld [vmem:[%s5 + $0x1c] sm:$0xf]
      %v1276 = vld [vmem:[%s5 + $0x20] sm:$0xf]
      %v1277 = vld [vmem:[%s5 + $0x24] sm:$0xf]
      %v1278 = vld [vmem:[%s5 + $0x28] sm:$0xf]
      %v1279 = vld [vmem:[%s5 + $0x2c] sm:$0xf]
      %v1280 = vld [vmem:[%s5 + $0x30] sm:$0xf]
      %v1281 = vld [vmem:[%s5 + $0x34] sm:$0xf]
      %v1282 = vld [vmem:[%s5 + $0x38] sm:$0xf]
      %v1283 = vld [vmem:[%s5 + $0x3c] sm:$0xf]
      %v1284 = vld [vmem:[%s6] sm:$0x1]
      %v1286 = vperm.slane %v1284, 0
      %v1304 = vunpack.c.l.b16 %v1268
      %v1305 = vunpack.c.l.b16 %v1269
      %v1306 = vunpack.c.l.b16 %v1270
      %v1307 = vunpack.c.l.b16 %v1271
      %v1308 = vunpack.c.l.b16 %v1272
      %v1309 = vunpack.c.l.b16 %v1273
      %v1310 = vunpack.c.l.b16 %v1274
      %v1311 = vunpack.c.l.b16 %v1275
      %v1312 = vunpack.c.l.b16 %v1276
      %v1313 = vunpack.c.l.b16 %v1277
      %v1314 = vunpack.c.l.b16 %v1278
      %v1315 = vunpack.c.l.b16 %v1279
      %v1316 = vunpack.c.l.b16 %v1280
      %v1317 = vunpack.c.l.b16 %v1281
      %v1318 = vunpack.c.l.b16 %v1282
      %v1319 = vunpack.c.l.b16 %v1283
      %v1320 = vpack.c.b16 %v1305, %v1304
      %v1321 = vpack.c.b16 %v1307, %v1306
      %v1322 = vpack.c.b16 %v1309, %v1308
      %v1323 = vpack.c.b16 %v1311, %v1310
      %v1324 = vpack.c.b16 %v1313, %v1312
      %v1325 = vpack.c.b16 %v1315, %v1314
      %v1326 = vpack.c.b16 %v1317, %v1316
      %v1327 = vpack.c.b16 %v1319, %v1318
      %1336 = vmatpush.bf16.msra.mxu0 %v1327
      %1337 = vmatpush.bf16.msra.mxu0 %v1326
      %1338 = vmatpush.bf16.msra.mxu0 %v1325
      %1339 = vmatpush.bf16.msra.mxu0 %v1324
      %1340 = vmatpush.bf16.msra.mxu0 %v1323
      %1341 = vmatpush.bf16.msra.mxu0 %v1322
      %1342 = vmatpush.bf16.msra.mxu0 %v1321
      %1343 = vmatpush.bf16.msra.mxu0 %v1320
      %1344 = vmatmul.bf16.gmra.mxu0 %v1236
      %v1345 = vpop.f32.mrf.mxu0
      %v1346 = vadd.f32 %v1286, %v1345
      %v1347 = vpop.f32.mrf.mxu0
      %v1348 = vadd.f32 %v1286, %v1347
      %1349 = vmatmul.bf16.gmra.mxu0 %v1237
      %v1350 = vpop.f32.mrf.mxu0
      %v1351 = vadd.f32 %v1286, %v1350
      %v1352 = vpop.f32.mrf.mxu0
      %v1353 = vadd.f32 %v1286, %v1352
      %1354 = vmatmul.bf16.gmra.mxu0 %v1238
      %v1355 = vpop.f32.mrf.mxu0
      %v1356 = vadd.f32 %v1286, %v1355
      %v1357 = vpop.f32.mrf.mxu0
      %v1358 = vadd.f32 %v1286, %v1357
      %1359 = vmatmul.bf16.gmra.mxu0 %v1239
      %v1360 = vpop.f32.mrf.mxu0
      %v1361 = vadd.f32 %v1286, %v1360
      %v1362 = vpop.f32.mrf.mxu0
      %v1363 = vadd.f32 %v1286, %v1362
      %1364 = vmatmul.bf16.gmra.mxu0 %v1240
      %v1365 = vpop.f32.mrf.mxu0
      %v1366 = vadd.f32 %v1286, %v1365
      %v1367 = vpop.f32.mrf.mxu0
      %v1368 = vadd.f32 %v1286, %v1367
      %1369 = vmatmul.bf16.gmra.mxu0 %v1241
      %v1370 = vpop.f32.mrf.mxu0
      %v1371 = vadd.f32 %v1286, %v1370
      %v1372 = vpop.f32.mrf.mxu0
      %v1373 = vadd.f32 %v1286, %v1372
      %1374 = vmatmul.bf16.gmra.mxu0 %v1242
      %v1375 = vpop.f32.mrf.mxu0
      %v1376 = vadd.f32 %v1286, %v1375
      %v1377 = vpop.f32.mrf.mxu0
      %v1378 = vadd.f32 %v1286, %v1377
      %1379 = vmatmul.bf16.gmra.mxu0 %v1243
      %v1380 = vpop.f32.mrf.mxu0
      %v1381 = vadd.f32 %v1286, %v1380
      %v1382 = vpop.f32.mrf.mxu0
      %v1383 = vadd.f32 %v1286, %v1382
      %1384 = vmatmul.bf16.gmra.mxu0 %v1244
      %v1385 = vpop.f32.mrf.mxu0
      %v1386 = vadd.f32 %v1286, %v1385
      %v1387 = vpop.f32.mrf.mxu0
      %v1388 = vadd.f32 %v1286, %v1387
      %1389 = vmatmul.bf16.gmra.mxu0 %v1245
      %v1390 = vpop.f32.mrf.mxu0
      %v1391 = vadd.f32 %v1286, %v1390
      %v1392 = vpop.f32.mrf.mxu0
      %v1393 = vadd.f32 %v1286, %v1392
      %1394 = vmatmul.bf16.gmra.mxu0 %v1246
      %v1395 = vpop.f32.mrf.mxu0
      %v1396 = vadd.f32 %v1286, %v1395
      %v1397 = vpop.f32.mrf.mxu0
      %v1398 = vadd.f32 %v1286, %v1397
      %1399 = vmatmul.bf16.gmra.mxu0 %v1247
      %v1400 = vpop.f32.mrf.mxu0
      %v1401 = vadd.f32 %v1286, %v1400
      %v1402 = vpop.f32.mrf.mxu0
      %v1403 = vadd.f32 %v1286, %v1402
      %1404 = vmatmul.bf16.gmra.mxu0 %v1248
      %v1405 = vpop.f32.mrf.mxu0
      %v1406 = vadd.f32 %v1286, %v1405
      %v1407 = vpop.f32.mrf.mxu0
      %v1408 = vadd.f32 %v1286, %v1407
      %1409 = vmatmul.bf16.gmra.mxu0 %v1249
      %v1410 = vpop.f32.mrf.mxu0
      %v1411 = vadd.f32 %v1286, %v1410
      %v1412 = vpop.f32.mrf.mxu0
      %v1413 = vadd.f32 %v1286, %v1412
      %1414 = vmatmul.bf16.gmra.mxu0 %v1250
      %v1415 = vpop.f32.mrf.mxu0
      %v1416 = vadd.f32 %v1286, %v1415
      %v1417 = vpop.f32.mrf.mxu0
      %v1418 = vadd.f32 %v1286, %v1417
      %1419 = vmatmul.bf16.gmra.mxu0 %v1251
      %v1420 = vpop.f32.mrf.mxu0
      %v1421 = vadd.f32 %v1286, %v1420
      %v1422 = vpop.f32.mrf.mxu0
      %v1423 = vadd.f32 %v1286, %v1422
      %1424 = vmatmul.bf16.gmra.mxu0 %v1252
      %v1425 = vpop.f32.mrf.mxu0
      %v1426 = vadd.f32 %v1286, %v1425
      %v1427 = vpop.f32.mrf.mxu0
      %v1428 = vadd.f32 %v1286, %v1427
      %1429 = vmatmul.bf16.gmra.mxu0 %v1253
      %v1430 = vpop.f32.mrf.mxu0
      %v1431 = vadd.f32 %v1286, %v1430
      %v1432 = vpop.f32.mrf.mxu0
      %v1433 = vadd.f32 %v1286, %v1432
      %1434 = vmatmul.bf16.gmra.mxu0 %v1254
      %v1435 = vpop.f32.mrf.mxu0
      %v1436 = vadd.f32 %v1286, %v1435
      %v1437 = vpop.f32.mrf.mxu0
      %v1438 = vadd.f32 %v1286, %v1437
      %1439 = vmatmul.bf16.gmra.mxu0 %v1255
      %v1440 = vpop.f32.mrf.mxu0
      %v1441 = vadd.f32 %v1286, %v1440
      %v1442 = vpop.f32.mrf.mxu0
      %v1443 = vadd.f32 %v1286, %v1442
      %1444 = vmatmul.bf16.gmra.mxu0 %v1256
      %v1445 = vpop.f32.mrf.mxu0
      %v1446 = vadd.f32 %v1286, %v1445
      %v1447 = vpop.f32.mrf.mxu0
      %v1448 = vadd.f32 %v1286, %v1447
      %1449 = vmatmul.bf16.gmra.mxu0 %v1257
      %v1450 = vpop.f32.mrf.mxu0
      %v1451 = vadd.f32 %v1286, %v1450
      %v1452 = vpop.f32.mrf.mxu0
      %v1453 = vadd.f32 %v1286, %v1452
      %1454 = vmatmul.bf16.gmra.mxu0 %v1258
      %v1455 = vpop.f32.mrf.mxu0
      %v1456 = vadd.f32 %v1286, %v1455
      %v1457 = vpop.f32.mrf.mxu0
      %v1458 = vadd.f32 %v1286, %v1457
      %1459 = vmatmul.bf16.gmra.mxu0 %v1259
      %v1460 = vpop.f32.mrf.mxu0
      %v1461 = vadd.f32 %v1286, %v1460
      %v1462 = vpop.f32.mrf.mxu0
      %v1463 = vadd.f32 %v1286, %v1462
      %1464 = vmatmul.bf16.gmra.mxu0 %v1260
      %v1465 = vpop.f32.mrf.mxu0
      %v1466 = vadd.f32 %v1286, %v1465
      %v1467 = vpop.f32.mrf.mxu0
      %v1468 = vadd.f32 %v1286, %v1467
      %1469 = vmatmul.bf16.gmra.mxu0 %v1261
      %v1470 = vpop.f32.mrf.mxu0
      %v1471 = vadd.f32 %v1286, %v1470
      %v1472 = vpop.f32.mrf.mxu0
      %v1473 = vadd.f32 %v1286, %v1472
      %1474 = vmatmul.bf16.gmra.mxu0 %v1262
      %v1475 = vpop.f32.mrf.mxu0
      %v1476 = vadd.f32 %v1286, %v1475
      %v1477 = vpop.f32.mrf.mxu0
      %v1478 = vadd.f32 %v1286, %v1477
      %1479 = vmatmul.bf16.gmra.mxu0 %v1263
      %v1480 = vpop.f32.mrf.mxu0
      %v1481 = vadd.f32 %v1286, %v1480
      %v1482 = vpop.f32.mrf.mxu0
      %v1483 = vadd.f32 %v1286, %v1482
      %1484 = vmatmul.bf16.gmra.mxu0 %v1264
      %v1485 = vpop.f32.mrf.mxu0
      %v1486 = vadd.f32 %v1286, %v1485
      %v1487 = vpop.f32.mrf.mxu0
      %v1488 = vadd.f32 %v1286, %v1487
      %1489 = vmatmul.bf16.gmra.mxu0 %v1265
      %v1490 = vpop.f32.mrf.mxu0
      %v1491 = vadd.f32 %v1286, %v1490
      %v1492 = vpop.f32.mrf.mxu0
      %v1493 = vadd.f32 %v1286, %v1492
      %1494 = vmatmul.bf16.gmra.mxu0 %v1266
      %v1495 = vpop.f32.mrf.mxu0
      %v1496 = vadd.f32 %v1286, %v1495
      %v1497 = vpop.f32.mrf.mxu0
      %v1498 = vadd.f32 %v1286, %v1497
      %1499 = vmatmul.bf16.gmra.mxu0 %v1267
      %v1500 = vpop.f32.mrf.mxu0
      %v1501 = vadd.f32 %v1286, %v1500
      %v1502 = vpop.f32.mrf.mxu0
      %v1503 = vadd.f32 %v1286, %v1502
      %1504 = vdwg.mxu0
      %v1505 = vmax.f32 %v1346, 0.0
      %v1506 = vmax.f32 %v1348, 0.0
      %v1507 = vmax.f32 %v1351, 0.0
      %v1508 = vmax.f32 %v1353, 0.0
      %v1509 = vmax.f32 %v1356, 0.0
      %v1510 = vmax.f32 %v1358, 0.0
      %v1511 = vmax.f32 %v1361, 0.0
      %v1512 = vmax.f32 %v1363, 0.0
      %v1513 = vmax.f32 %v1366, 0.0
      %v1514 = vmax.f32 %v1368, 0.0
      %v1515 = vmax.f32 %v1371, 0.0
      %v1516 = vmax.f32 %v1373, 0.0
      %v1517 = vmax.f32 %v1376, 0.0
      %v1518 = vmax.f32 %v1378, 0.0
      %v1519 = vmax.f32 %v1381, 0.0
      %v1520 = vmax.f32 %v1383, 0.0
      %v1521 = vmax.f32 %v1386, 0.0
      %v1522 = vmax.f32 %v1388, 0.0
      %v1523 = vmax.f32 %v1391, 0.0
      %v1524 = vmax.f32 %v1393, 0.0
      %v1525 = vmax.f32 %v1396, 0.0
      %v1526 = vmax.f32 %v1398, 0.0
      %v1527 = vmax.f32 %v1401, 0.0
      %v1528 = vmax.f32 %v1403, 0.0
      %v1529 = vmax.f32 %v1406, 0.0
      %v1530 = vmax.f32 %v1408, 0.0
      %v1531 = vmax.f32 %v1411, 0.0
      %v1532 = vmax.f32 %v1413, 0.0
      %v1533 = vmax.f32 %v1416, 0.0
      %v1534 = vmax.f32 %v1418, 0.0
      %v1535 = vmax.f32 %v1421, 0.0
      %v1536 = vmax.f32 %v1423, 0.0
      %v1537 = vmax.f32 %v1426, 0.0
      %v1538 = vmax.f32 %v1428, 0.0
      %v1539 = vmax.f32 %v1431, 0.0
      %v1540 = vmax.f32 %v1433, 0.0
      %v1541 = vmax.f32 %v1436, 0.0
      %v1542 = vmax.f32 %v1438, 0.0
      %v1543 = vmax.f32 %v1441, 0.0
      %v1544 = vmax.f32 %v1443, 0.0
      %v1545 = vmax.f32 %v1446, 0.0
      %v1546 = vmax.f32 %v1448, 0.0
      %v1547 = vmax.f32 %v1451, 0.0
      %v1548 = vmax.f32 %v1453, 0.0
      %v1549 = vmax.f32 %v1456, 0.0
      %v1550 = vmax.f32 %v1458, 0.0
      %v1551 = vmax.f32 %v1461, 0.0
      %v1552 = vmax.f32 %v1463, 0.0
      %v1553 = vmax.f32 %v1466, 0.0
      %v1554 = vmax.f32 %v1468, 0.0
      %v1555 = vmax.f32 %v1471, 0.0
      %v1556 = vmax.f32 %v1473, 0.0
      %v1557 = vmax.f32 %v1476, 0.0
      %v1558 = vmax.f32 %v1478, 0.0
      %v1559 = vmax.f32 %v1481, 0.0
      %v1560 = vmax.f32 %v1483, 0.0
      %v1561 = vmax.f32 %v1486, 0.0
      %v1562 = vmax.f32 %v1488, 0.0
      %v1563 = vmax.f32 %v1491, 0.0
      %v1564 = vmax.f32 %v1493, 0.0
      %v1565 = vmax.f32 %v1496, 0.0
      %v1566 = vmax.f32 %v1498, 0.0
      %v1567 = vmax.f32 %v1501, 0.0
      %v1568 = vmax.f32 %v1503, 0.0
      %v1569 = vpack.c.bf16 %v1506, %v1505
      %v1570 = vpack.c.bf16 %v1508, %v1507
      %v1571 = vpack.c.bf16 %v1510, %v1509
      %v1572 = vpack.c.bf16 %v1512, %v1511
      %v1573 = vpack.c.bf16 %v1514, %v1513
      %v1574 = vpack.c.bf16 %v1516, %v1515
      %v1575 = vpack.c.bf16 %v1518, %v1517
      %v1576 = vpack.c.bf16 %v1520, %v1519
      %v1577 = vpack.c.bf16 %v1522, %v1521
      %v1578 = vpack.c.bf16 %v1524, %v1523
      %v1579 = vpack.c.bf16 %v1526, %v1525
      %v1580 = vpack.c.bf16 %v1528, %v1527
      %v1581 = vpack.c.bf16 %v1530, %v1529
      %v1582 = vpack.c.bf16 %v1532, %v1531
      %v1583 = vpack.c.bf16 %v1534, %v1533
      %v1584 = vpack.c.bf16 %v1536, %v1535
      %v1585 = vpack.c.bf16 %v1538, %v1537
      %v1586 = vpack.c.bf16 %v1540, %v1539
      %v1587 = vpack.c.bf16 %v1542, %v1541
      %v1588 = vpack.c.bf16 %v1544, %v1543
      %v1589 = vpack.c.bf16 %v1546, %v1545
      %v1590 = vpack.c.bf16 %v1548, %v1547
      %v1591 = vpack.c.bf16 %v1550, %v1549
      %v1592 = vpack.c.bf16 %v1552, %v1551
      %v1593 = vpack.c.bf16 %v1554, %v1553
      %v1594 = vpack.c.bf16 %v1556, %v1555
      %v1595 = vpack.c.bf16 %v1558, %v1557
      %v1596 = vpack.c.bf16 %v1560, %v1559
      %v1597 = vpack.c.bf16 %v1562, %v1561
      %v1598 = vpack.c.bf16 %v1564, %v1563
      %v1599 = vpack.c.bf16 %v1566, %v1565
      %v1600 = vpack.c.bf16 %v1568, %v1567
      %v1601 = vld [vmem:[%s7] sm:$0xf]
      %v1602 = vld [vmem:[%s7 + $0x4] sm:$0xf]
      %v1603 = vld [vmem:[%s7 + $0x8] sm:$0xf]
      %v1604 = vld [vmem:[%s7 + $0xc] sm:$0xf]
      %v1605 = vld [vmem:[%s7 + $0x10] sm:$0xf]
      %v1606 = vld [vmem:[%s7 + $0x14] sm:$0xf]
      %v1607 = vld [vmem:[%s7 + $0x18] sm:$0xf]
      %v1608 = vld [vmem:[%s7 + $0x1c] sm:$0xf]
      %v1609 = vld [vmem:[%s7 + $0x20] sm:$0xf]
      %v1610 = vld [vmem:[%s7 + $0x24] sm:$0xf]
      %v1611 = vld [vmem:[%s7 + $0x28] sm:$0xf]
      %v1612 = vld [vmem:[%s7 + $0x2c] sm:$0xf]
      %v1613 = vld [vmem:[%s7 + $0x30] sm:$0xf]
      %v1614 = vld [vmem:[%s7 + $0x34] sm:$0xf]
      %v1615 = vld [vmem:[%s7 + $0x38] sm:$0xf]
      %v1616 = vld [vmem:[%s7 + $0x3c] sm:$0xf]
      %v1617 = vld [vmem:[%s8] sm:$0x1]
      %v1619 = vperm.slane %v1617, 0
      %v1637 = vunpack.c.l.b16 %v1601
      %v1638 = vunpack.c.l.b16 %v1602
      %v1639 = vunpack.c.l.b16 %v1603
      %v1640 = vunpack.c.l.b16 %v1604
      %v1641 = vunpack.c.l.b16 %v1605
      %v1642 = vunpack.c.l.b16 %v1606
      %v1643 = vunpack.c.l.b16 %v1607
      %v1644 = vunpack.c.l.b16 %v1608
      %v1645 = vunpack.c.l.b16 %v1609
      %v1646 = vunpack.c.l.b16 %v1610
      %v1647 = vunpack.c.l.b16 %v1611
      %v1648 = vunpack.c.l.b16 %v1612
      %v1649 = vunpack.c.l.b16 %v1613
      %v1650 = vunpack.c.l.b16 %v1614
      %v1651 = vunpack.c.l.b16 %v1615
      %v1652 = vunpack.c.l.b16 %v1616
      %v1653 = vpack.c.b16 %v1638, %v1637
      %v1654 = vpack.c.b16 %v1640, %v1639
      %v1655 = vpack.c.b16 %v1642, %v1641
      %v1656 = vpack.c.b16 %v1644, %v1643
      %v1657 = vpack.c.b16 %v1646, %v1645
      %v1658 = vpack.c.b16 %v1648, %v1647
      %v1659 = vpack.c.b16 %v1650, %v1649
      %v1660 = vpack.c.b16 %v1652, %v1651
      %1669 = vmatpush.bf16.msra.mxu0 %v1660
      %1670 = vmatpush.bf16.msra.mxu0 %v1659
      %1671 = vmatpush.bf16.msra.mxu0 %v1658
      %1672 = vmatpush.bf16.msra.mxu0 %v1657
      %1673 = vmatpush.bf16.msra.mxu0 %v1656
      %1674 = vmatpush.bf16.msra.mxu0 %v1655
      %1675 = vmatpush.bf16.msra.mxu0 %v1654
      %1676 = vmatpush.bf16.msra.mxu0 %v1653
      %1677 = vmatmul.bf16.gmra.mxu0 %v1569
      %v1678 = vpop.f32.mrf.mxu0
      %v1679 = vadd.f32 %v1619, %v1678
      %v1680 = vpop.f32.mrf.mxu0
      %v1681 = vadd.f32 %v1619, %v1680
      %1682 = vmatmul.bf16.gmra.mxu0 %v1570
      %v1683 = vpop.f32.mrf.mxu0
      %v1684 = vadd.f32 %v1619, %v1683
      %v1685 = vpop.f32.mrf.mxu0
      %v1686 = vadd.f32 %v1619, %v1685
      %1687 = vmatmul.bf16.gmra.mxu0 %v1571
      %v1688 = vpop.f32.mrf.mxu0
      %v1689 = vadd.f32 %v1619, %v1688
      %v1690 = vpop.f32.mrf.mxu0
      %v1691 = vadd.f32 %v1619, %v1690
      %1692 = vmatmul.bf16.gmra.mxu0 %v1572
      %v1693 = vpop.f32.mrf.mxu0
      %v1694 = vadd.f32 %v1619, %v1693
      %v1695 = vpop.f32.mrf.mxu0
      %v1696 = vadd.f32 %v1619, %v1695
      %1697 = vmatmul.bf16.gmra.mxu0 %v1573
      %v1698 = vpop.f32.mrf.mxu0
      %v1699 = vadd.f32 %v1619, %v1698
      %v1700 = vpop.f32.mrf.mxu0
      %v1701 = vadd.f32 %v1619, %v1700
      %1702 = vmatmul.bf16.gmra.mxu0 %v1574
      %v1703 = vpop.f32.mrf.mxu0
      %v1704 = vadd.f32 %v1619, %v1703
      %v1705 = vpop.f32.mrf.mxu0
      %v1706 = vadd.f32 %v1619, %v1705
      %1707 = vmatmul.bf16.gmra.mxu0 %v1575
      %v1708 = vpop.f32.mrf.mxu0
      %v1709 = vadd.f32 %v1619, %v1708
      %v1710 = vpop.f32.mrf.mxu0
      %v1711 = vadd.f32 %v1619, %v1710
      %1712 = vmatmul.bf16.gmra.mxu0 %v1576
      %v1713 = vpop.f32.mrf.mxu0
      %v1714 = vadd.f32 %v1619, %v1713
      %v1715 = vpop.f32.mrf.mxu0
      %v1716 = vadd.f32 %v1619, %v1715
      %1717 = vmatmul.bf16.gmra.mxu0 %v1577
      %v1718 = vpop.f32.mrf.mxu0
      %v1719 = vadd.f32 %v1619, %v1718
      %v1720 = vpop.f32.mrf.mxu0
      %v1721 = vadd.f32 %v1619, %v1720
      %1722 = vmatmul.bf16.gmra.mxu0 %v1578
      %v1723 = vpop.f32.mrf.mxu0
      %v1724 = vadd.f32 %v1619, %v1723
      %v1725 = vpop.f32.mrf.mxu0
      %v1726 = vadd.f32 %v1619, %v1725
      %1727 = vmatmul.bf16.gmra.mxu0 %v1579
      %v1728 = vpop.f32.mrf.mxu0
      %v1729 = vadd.f32 %v1619, %v1728
      %v1730 = vpop.f32.mrf.mxu0
      %v1731 = vadd.f32 %v1619, %v1730
      %1732 = vmatmul.bf16.gmra.mxu0 %v1580
      %v1733 = vpop.f32.mrf.mxu0
      %v1734 = vadd.f32 %v1619, %v1733
      %v1735 = vpop.f32.mrf.mxu0
      %v1736 = vadd.f32 %v1619, %v1735
      %1737 = vmatmul.bf16.gmra.mxu0 %v1581
      %v1738 = vpop.f32.mrf.mxu0
      %v1739 = vadd.f32 %v1619, %v1738
      %v1740 = vpop.f32.mrf.mxu0
      %v1741 = vadd.f32 %v1619, %v1740
      %1742 = vmatmul.bf16.gmra.mxu0 %v1582
      %v1743 = vpop.f32.mrf.mxu0
      %v1744 = vadd.f32 %v1619, %v1743
      %v1745 = vpop.f32.mrf.mxu0
      %v1746 = vadd.f32 %v1619, %v1745
      %1747 = vmatmul.bf16.gmra.mxu0 %v1583
      %v1748 = vpop.f32.mrf.mxu0
      %v1749 = vadd.f32 %v1619, %v1748
      %v1750 = vpop.f32.mrf.mxu0
      %v1751 = vadd.f32 %v1619, %v1750
      %1752 = vmatmul.bf16.gmra.mxu0 %v1584
      %v1753 = vpop.f32.mrf.mxu0
      %v1754 = vadd.f32 %v1619, %v1753
      %v1755 = vpop.f32.mrf.mxu0
      %v1756 = vadd.f32 %v1619, %v1755
      %1757 = vmatmul.bf16.gmra.mxu0 %v1585
      %v1758 = vpop.f32.mrf.mxu0
      %v1759 = vadd.f32 %v1619, %v1758
      %v1760 = vpop.f32.mrf.mxu0
      %v1761 = vadd.f32 %v1619, %v1760
      %1762 = vmatmul.bf16.gmra.mxu0 %v1586
      %v1763 = vpop.f32.mrf.mxu0
      %v1764 = vadd.f32 %v1619, %v1763
      %v1765 = vpop.f32.mrf.mxu0
      %v1766 = vadd.f32 %v1619, %v1765
      %1767 = vmatmul.bf16.gmra.mxu0 %v1587
      %v1768 = vpop.f32.mrf.mxu0
      %v1769 = vadd.f32 %v1619, %v1768
      %v1770 = vpop.f32.mrf.mxu0
      %v1771 = vadd.f32 %v1619, %v1770
      %1772 = vmatmul.bf16.gmra.mxu0 %v1588
      %v1773 = vpop.f32.mrf.mxu0
      %v1774 = vadd.f32 %v1619, %v1773
      %v1775 = vpop.f32.mrf.mxu0
      %v1776 = vadd.f32 %v1619, %v1775
      %1777 = vmatmul.bf16.gmra.mxu0 %v1589
      %v1778 = vpop.f32.mrf.mxu0
      %v1779 = vadd.f32 %v1619, %v1778
      %v1780 = vpop.f32.mrf.mxu0
      %v1781 = vadd.f32 %v1619, %v1780
      %1782 = vmatmul.bf16.gmra.mxu0 %v1590
      %v1783 = vpop.f32.mrf.mxu0
      %v1784 = vadd.f32 %v1619, %v1783
      %v1785 = vpop.f32.mrf.mxu0
      %v1786 = vadd.f32 %v1619, %v1785
      %1787 = vmatmul.bf16.gmra.mxu0 %v1591
      %v1788 = vpop.f32.mrf.mxu0
      %v1789 = vadd.f32 %v1619, %v1788
      %v1790 = vpop.f32.mrf.mxu0
      %v1791 = vadd.f32 %v1619, %v1790
      %1792 = vmatmul.bf16.gmra.mxu0 %v1592
      %v1793 = vpop.f32.mrf.mxu0
      %v1794 = vadd.f32 %v1619, %v1793
      %v1795 = vpop.f32.mrf.mxu0
      %v1796 = vadd.f32 %v1619, %v1795
      %1797 = vmatmul.bf16.gmra.mxu0 %v1593
      %v1798 = vpop.f32.mrf.mxu0
      %v1799 = vadd.f32 %v1619, %v1798
      %v1800 = vpop.f32.mrf.mxu0
      %v1801 = vadd.f32 %v1619, %v1800
      %1802 = vmatmul.bf16.gmra.mxu0 %v1594
      %v1803 = vpop.f32.mrf.mxu0
      %v1804 = vadd.f32 %v1619, %v1803
      %v1805 = vpop.f32.mrf.mxu0
      %v1806 = vadd.f32 %v1619, %v1805
      %1807 = vmatmul.bf16.gmra.mxu0 %v1595
      %v1808 = vpop.f32.mrf.mxu0
      %v1809 = vadd.f32 %v1619, %v1808
      %v1810 = vpop.f32.mrf.mxu0
      %v1811 = vadd.f32 %v1619, %v1810
      %1812 = vmatmul.bf16.gmra.mxu0 %v1596
      %v1813 = vpop.f32.mrf.mxu0
      %v1814 = vadd.f32 %v1619, %v1813
      %v1815 = vpop.f32.mrf.mxu0
      %v1816 = vadd.f32 %v1619, %v1815
      %1817 = vmatmul.bf16.gmra.mxu0 %v1597
      %v1818 = vpop.f32.mrf.mxu0
      %v1819 = vadd.f32 %v1619, %v1818
      %v1820 = vpop.f32.mrf.mxu0
      %v1821 = vadd.f32 %v1619, %v1820
      %1822 = vmatmul.bf16.gmra.mxu0 %v1598
      %v1823 = vpop.f32.mrf.mxu0
      %v1824 = vadd.f32 %v1619, %v1823
      %v1825 = vpop.f32.mrf.mxu0
      %v1826 = vadd.f32 %v1619, %v1825
      %1827 = vmatmul.bf16.gmra.mxu0 %v1599
      %v1828 = vpop.f32.mrf.mxu0
      %v1829 = vadd.f32 %v1619, %v1828
      %v1830 = vpop.f32.mrf.mxu0
      %v1831 = vadd.f32 %v1619, %v1830
      %1832 = vmatmul.bf16.gmra.mxu0 %v1600
      %v1833 = vpop.f32.mrf.mxu0
      %v1834 = vadd.f32 %v1619, %v1833
      %v1835 = vpop.f32.mrf.mxu0
      %v1836 = vadd.f32 %v1619, %v1835
      %1837 = vdwg.mxu0
      %v1838 = vxor.u32 %v1679, 2147483648
      %v1839 = vxor.u32 %v1681, 2147483648
      %v1840 = vxor.u32 %v1684, 2147483648
      %v1841 = vxor.u32 %v1686, 2147483648
      %v1842 = vxor.u32 %v1689, 2147483648
      %v1843 = vxor.u32 %v1691, 2147483648
      %v1844 = vxor.u32 %v1694, 2147483648
      %v1845 = vxor.u32 %v1696, 2147483648
      %v1846 = vxor.u32 %v1699, 2147483648
      %v1847 = vxor.u32 %v1701, 2147483648
      %v1848 = vxor.u32 %v1704, 2147483648
      %v1849 = vxor.u32 %v1706, 2147483648
      %v1850 = vxor.u32 %v1709, 2147483648
      %v1851 = vxor.u32 %v1711, 2147483648
      %v1852 = vxor.u32 %v1714, 2147483648
      %v1853 = vxor.u32 %v1716, 2147483648
      %v1854 = vxor.u32 %v1719, 2147483648
      %v1855 = vxor.u32 %v1721, 2147483648
      %v1856 = vxor.u32 %v1724, 2147483648
      %v1857 = vxor.u32 %v1726, 2147483648
      %v1858 = vxor.u32 %v1729, 2147483648
      %v1859 = vxor.u32 %v1731, 2147483648
      %v1860 = vxor.u32 %v1734, 2147483648
      %v1861 = vxor.u32 %v1736, 2147483648
      %v1862 = vxor.u32 %v1739, 2147483648
      %v1863 = vxor.u32 %v1741, 2147483648
      %v1864 = vxor.u32 %v1744, 2147483648
      %v1865 = vxor.u32 %v1746, 2147483648
      %v1866 = vxor.u32 %v1749, 2147483648
      %v1867 = vxor.u32 %v1751, 2147483648
      %v1868 = vxor.u32 %v1754, 2147483648
      %v1869 = vxor.u32 %v1756, 2147483648
      %v1870 = vxor.u32 %v1759, 2147483648
      %v1871 = vxor.u32 %v1761, 2147483648
      %v1872 = vxor.u32 %v1764, 2147483648
      %v1873 = vxor.u32 %v1766, 2147483648
      %v1874 = vxor.u32 %v1769, 2147483648
      %v1875 = vxor.u32 %v1771, 2147483648
      %v1876 = vxor.u32 %v1774, 2147483648
      %v1877 = vxor.u32 %v1776, 2147483648
      %v1878 = vxor.u32 %v1779, 2147483648
      %v1879 = vxor.u32 %v1781, 2147483648
      %v1880 = vxor.u32 %v1784, 2147483648
      %v1881 = vxor.u32 %v1786, 2147483648
      %v1882 = vxor.u32 %v1789, 2147483648
      %v1883 = vxor.u32 %v1791, 2147483648
      %v1884 = vxor.u32 %v1794, 2147483648
      %v1885 = vxor.u32 %v1796, 2147483648
      %v1886 = vxor.u32 %v1799, 2147483648
      %v1887 = vxor.u32 %v1801, 2147483648
      %v1888 = vxor.u32 %v1804, 2147483648
      %v1889 = vxor.u32 %v1806, 2147483648
      %v1890 = vxor.u32 %v1809, 2147483648
      %v1891 = vxor.u32 %v1811, 2147483648
      %v1892 = vxor.u32 %v1814, 2147483648
      %v1893 = vxor.u32 %v1816, 2147483648
      %v1894 = vxor.u32 %v1819, 2147483648
      %v1895 = vxor.u32 %v1821, 2147483648
      %v1896 = vxor.u32 %v1824, 2147483648
      %v1897 = vxor.u32 %v1826, 2147483648
      %v1898 = vxor.u32 %v1829, 2147483648
      %v1899 = vxor.u32 %v1831, 2147483648
      %v1900 = vxor.u32 %v1834, 2147483648
      %v1901 = vxor.u32 %v1836, 2147483648
      %v1902 = vmul.f32 %v1838, 1.442695
      %v1903 = vpow.pop %v1902
      %v1904 = vmul.f32 %v1839, 1.442695
      %v1905 = vpow.pop %v1904
      %v1906 = vmul.f32 %v1840, 1.442695
      %v1907 = vpow.pop %v1906
      %v1908 = vmul.f32 %v1841, 1.442695
      %v1909 = vpow.pop %v1908
      %v1910 = vmul.f32 %v1842, 1.442695
      %v1911 = vpow.pop %v1910
      %v1912 = vmul.f32 %v1843, 1.442695
      %v1913 = vpow.pop %v1912
      %v1914 = vmul.f32 %v1844, 1.442695
      %v1915 = vpow.pop %v1914
      %v1916 = vmul.f32 %v1845, 1.442695
      %v1917 = vpow.pop %v1916
      %v1918 = vmul.f32 %v1846, 1.442695
      %v1919 = vpow.pop %v1918
      %v1920 = vmul.f32 %v1847, 1.442695
      %v1921 = vpow.pop %v1920
      %v1922 = vmul.f32 %v1848, 1.442695
      %v1923 = vpow.pop %v1922
      %v1924 = vmul.f32 %v1849, 1.442695
      %v1925 = vpow.pop %v1924
      %v1926 = vmul.f32 %v1850, 1.442695
      %v1927 = vpow.pop %v1926
      %v1928 = vmul.f32 %v1851, 1.442695
      %v1929 = vpow.pop %v1928
      %v1930 = vmul.f32 %v1852, 1.442695
      %v1931 = vpow.pop %v1930
      %v1932 = vmul.f32 %v1853, 1.442695
      %v1933 = vpow.pop %v1932
      %v1934 = vmul.f32 %v1854, 1.442695
      %v1935 = vpow.pop %v1934
      %v1936 = vmul.f32 %v1855, 1.442695
      %v1937 = vpow.pop %v1936
      %v1938 = vmul.f32 %v1856, 1.442695
      %v1939 = vpow.pop %v1938
      %v1940 = vmul.f32 %v1857, 1.442695
      %v1941 = vpow.pop %v1940
      %v1942 = vmul.f32 %v1858, 1.442695
      %v1943 = vpow.pop %v1942
      %v1944 = vmul.f32 %v1859, 1.442695
      %v1945 = vpow.pop %v1944
      %v1946 = vmul.f32 %v1860, 1.442695
      %v1947 = vpow.pop %v1946
      %v1948 = vmul.f32 %v1861, 1.442695
      %v1949 = vpow.pop %v1948
      %v1950 = vmul.f32 %v1862, 1.442695
      %v1951 = vpow.pop %v1950
      %v1952 = vmul.f32 %v1863, 1.442695
      %v1953 = vpow.pop %v1952
      %v1954 = vmul.f32 %v1864, 1.442695
      %v1955 = vpow.pop %v1954
      %v1956 = vmul.f32 %v1865, 1.442695
      %v1957 = vpow.pop %v1956
      %v1958 = vmul.f32 %v1866, 1.442695
      %v1959 = vpow.pop %v1958
      %v1960 = vmul.f32 %v1867, 1.442695
      %v1961 = vpow.pop %v1960
      %v1962 = vmul.f32 %v1868, 1.442695
      %v1963 = vpow.pop %v1962
      %v1964 = vmul.f32 %v1869, 1.442695
      %v1965 = vpow.pop %v1964
      %v1966 = vmul.f32 %v1870, 1.442695
      %v1967 = vpow.pop %v1966
      %v1968 = vmul.f32 %v1871, 1.442695
      %v1969 = vpow.pop %v1968
      %v1970 = vmul.f32 %v1872, 1.442695
      %v1971 = vpow.pop %v1970
      %v1972 = vmul.f32 %v1873, 1.442695
      %v1973 = vpow.pop %v1972
      %v1974 = vmul.f32 %v1874, 1.442695
      %v1975 = vpow.pop %v1974
      %v1976 = vmul.f32 %v1875, 1.442695
      %v1977 = vpow.pop %v1976
      %v1978 = vmul.f32 %v1876, 1.442695
      %v1979 = vpow.pop %v1978
      %v1980 = vmul.f32 %v1877, 1.442695
      %v1981 = vpow.pop %v1980
      %v1982 = vmul.f32 %v1878, 1.442695
      %v1983 = vpow.pop %v1982
      %v1984 = vmul.f32 %v1879, 1.442695
      %v1985 = vpow.pop %v1984
      %v1986 = vmul.f32 %v1880, 1.442695
      %v1987 = vpow.pop %v1986
      %v1988 = vmul.f32 %v1881, 1.442695
      %v1989 = vpow.pop %v1988
      %v1990 = vmul.f32 %v1882, 1.442695
      %v1991 = vpow.pop %v1990
      %v1992 = vmul.f32 %v1883, 1.442695
      %v1993 = vpow.pop %v1992
      %v1994 = vmul.f32 %v1884, 1.442695
      %v1995 = vpow.pop %v1994
      %v1996 = vmul.f32 %v1885, 1.442695
      %v1997 = vpow.pop %v1996
      %v1998 = vmul.f32 %v1886, 1.442695
      %v1999 = vpow.pop %v1998
      %v2000 = vmul.f32 %v1887, 1.442695
      %v2001 = vpow.pop %v2000
      %v2002 = vmul.f32 %v1888, 1.442695
      %v2003 = vpow.pop %v2002
      %v2004 = vmul.f32 %v1889, 1.442695
      %v2005 = vpow.pop %v2004
      %v2006 = vmul.f32 %v1890, 1.442695
      %v2007 = vpow.pop %v2006
      %v2008 = vmul.f32 %v1891, 1.442695
      %v2009 = vpow.pop %v2008
      %v2010 = vmul.f32 %v1892, 1.442695
      %v2011 = vpow.pop %v2010
      %v2012 = vmul.f32 %v1893, 1.442695
      %v2013 = vpow.pop %v2012
      %v2014 = vmul.f32 %v1894, 1.442695
      %v2015 = vpow.pop %v2014
      %v2016 = vmul.f32 %v1895, 1.442695
      %v2017 = vpow.pop %v2016
      %v2018 = vmul.f32 %v1896, 1.442695
      %v2019 = vpow.pop %v2018
      %v2020 = vmul.f32 %v1897, 1.442695
      %v2021 = vpow.pop %v2020
      %v2022 = vmul.f32 %v1898, 1.442695
      %v2023 = vpow.pop %v2022
      %v2024 = vmul.f32 %v1899, 1.442695
      %v2025 = vpow.pop %v2024
      %v2026 = vmul.f32 %v1900, 1.442695
      %v2027 = vpow.pop %v2026
      %v2028 = vmul.f32 %v1901, 1.442695
      %v2029 = vpow.pop %v2028
      %v2030 = vadd.f32 %v1903, 1.0
      %v2031 = vadd.f32 %v1905, 1.0
      %v2032 = vadd.f32 %v1907, 1.0
      %v2033 = vadd.f32 %v1909, 1.0
      %v2034 = vadd.f32 %v1911, 1.0
      %v2035 = vadd.f32 %v1913, 1.0
      %v2036 = vadd.f32 %v1915, 1.0
      %v2037 = vadd.f32 %v1917, 1.0
      %v2038 = vadd.f32 %v1919, 1.0
      %v2039 = vadd.f32 %v1921, 1.0
      %v2040 = vadd.f32 %v1923, 1.0
      %v2041 = vadd.f32 %v1925, 1.0
      %v2042 = vadd.f32 %v1927, 1.0
      %v2043 = vadd.f32 %v1929, 1.0
      %v2044 = vadd.f32 %v1931, 1.0
      %v2045 = vadd.f32 %v1933, 1.0
      %v2046 = vadd.f32 %v1935, 1.0
      %v2047 = vadd.f32 %v1937, 1.0
      %v2048 = vadd.f32 %v1939, 1.0
      %v2049 = vadd.f32 %v1941, 1.0
      %v2050 = vadd.f32 %v1943, 1.0
      %v2051 = vadd.f32 %v1945, 1.0
      %v2052 = vadd.f32 %v1947, 1.0
      %v2053 = vadd.f32 %v1949, 1.0
      %v2054 = vadd.f32 %v1951, 1.0
      %v2055 = vadd.f32 %v1953, 1.0
      %v2056 = vadd.f32 %v1955, 1.0
      %v2057 = vadd.f32 %v1957, 1.0
      %v2058 = vadd.f32 %v1959, 1.0
      %v2059 = vadd.f32 %v1961, 1.0
      %v2060 = vadd.f32 %v1963, 1.0
      %v2061 = vadd.f32 %v1965, 1.0
      %v2062 = vadd.f32 %v1967, 1.0
      %v2063 = vadd.f32 %v1969, 1.0
      %v2064 = vadd.f32 %v1971, 1.0
      %v2065 = vadd.f32 %v1973, 1.0
      %v2066 = vadd.f32 %v1975, 1.0
      %v2067 = vadd.f32 %v1977, 1.0
      %v2068 = vadd.f32 %v1979, 1.0
      %v2069 = vadd.f32 %v1981, 1.0
      %v2070 = vadd.f32 %v1983, 1.0
      %v2071 = vadd.f32 %v1985, 1.0
      %v2072 = vadd.f32 %v1987, 1.0
      %v2073 = vadd.f32 %v1989, 1.0
      %v2074 = vadd.f32 %v1991, 1.0
      %v2075 = vadd.f32 %v1993, 1.0
      %v2076 = vadd.f32 %v1995, 1.0
      %v2077 = vadd.f32 %v1997, 1.0
      %v2078 = vadd.f32 %v1999, 1.0
      %v2079 = vadd.f32 %v2001, 1.0
      %v2080 = vadd.f32 %v2003, 1.0
      %v2081 = vadd.f32 %v2005, 1.0
      %v2082 = vadd.f32 %v2007, 1.0
      %v2083 = vadd.f32 %v2009, 1.0
      %v2084 = vadd.f32 %v2011, 1.0
      %v2085 = vadd.f32 %v2013, 1.0
      %v2086 = vadd.f32 %v2015, 1.0
      %v2087 = vadd.f32 %v2017, 1.0
      %v2088 = vadd.f32 %v2019, 1.0
      %v2089 = vadd.f32 %v2021, 1.0
      %v2090 = vadd.f32 %v2023, 1.0
      %v2091 = vadd.f32 %v2025, 1.0
      %v2092 = vadd.f32 %v2027, 1.0
      %v2093 = vadd.f32 %v2029, 1.0
      %v2094 = vrcp.pop %v2030
      %v2095 = vmul.f32 %v2030, %v2094
      %v2096 = vsub.f32 1.0, %v2095
      %v2097 = vmul.f32 %v2094, %v2096
      %v2098 = vadd.f32 %v2094, %v2097
      %vm2099 = vweird.f32 %v2030
      %vm2100 = vweird.f32 %v2094
      %vm2101 = vmor %vm2099, %vm2100
      %v2102 = vsel %vm2101, %v2094, %v2098
      %v2103 = vand.u32 2147483647, %v2030
      %vm2104 = vcmp.eq.f32.partialorder %v2103, 8.507059e+37
      %v2105 = vand.u32 %v2030, 2147483648
      %v2106 = vor.u32 1.1754944e-38, %v2105
      %v2107 = vsel %vm2104, %v2106, %v2102
      %v2108 = vmul.f32 1.0, %v2107
      %v2109 = vrcp.pop %v2031
      %v2110 = vmul.f32 %v2031, %v2109
      %v2111 = vsub.f32 1.0, %v2110
      %v2112 = vmul.f32 %v2109, %v2111
      %v2113 = vadd.f32 %v2109, %v2112
      %vm2114 = vweird.f32 %v2031
      %vm2115 = vweird.f32 %v2109
      %vm2116 = vmor %vm2114, %vm2115
      %v2117 = vsel %vm2116, %v2109, %v2113
      %v2118 = vand.u32 2147483647, %v2031
      %vm2119 = vcmp.eq.f32.partialorder %v2118, 8.507059e+37
      %v2120 = vand.u32 %v2031, 2147483648
      %v2121 = vor.u32 1.1754944e-38, %v2120
      %v2122 = vsel %vm2119, %v2121, %v2117
      %v2123 = vmul.f32 1.0, %v2122
      %v2124 = vrcp.pop %v2032
      %v2125 = vmul.f32 %v2032, %v2124
      %v2126 = vsub.f32 1.0, %v2125
      %v2127 = vmul.f32 %v2124, %v2126
      %v2128 = vadd.f32 %v2124, %v2127
      %vm2129 = vweird.f32 %v2032
      %vm2130 = vweird.f32 %v2124
      %vm2131 = vmor %vm2129, %vm2130
      %v2132 = vsel %vm2131, %v2124, %v2128
      %v2133 = vand.u32 2147483647, %v2032
      %vm2134 = vcmp.eq.f32.partialorder %v2133, 8.507059e+37
      %v2135 = vand.u32 %v2032, 2147483648
      %v2136 = vor.u32 1.1754944e-38, %v2135
      %v2137 = vsel %vm2134, %v2136, %v2132
      %v2138 = vmul.f32 1.0, %v2137
      %v2139 = vrcp.pop %v2033
      %v2140 = vmul.f32 %v2033, %v2139
      %v2141 = vsub.f32 1.0, %v2140
      %v2142 = vmul.f32 %v2139, %v2141
      %v2143 = vadd.f32 %v2139, %v2142
      %vm2144 = vweird.f32 %v2033
      %vm2145 = vweird.f32 %v2139
      %vm2146 = vmor %vm2144, %vm2145
      %v2147 = vsel %vm2146, %v2139, %v2143
      %v2148 = vand.u32 2147483647, %v2033
      %vm2149 = vcmp.eq.f32.partialorder %v2148, 8.507059e+37
      %v2150 = vand.u32 %v2033, 2147483648
      %v2151 = vor.u32 1.1754944e-38, %v2150
      %v2152 = vsel %vm2149, %v2151, %v2147
      %v2153 = vmul.f32 1.0, %v2152
      %v2154 = vrcp.pop %v2034
      %v2155 = vmul.f32 %v2034, %v2154
      %v2156 = vsub.f32 1.0, %v2155
      %v2157 = vmul.f32 %v2154, %v2156
      %v2158 = vadd.f32 %v2154, %v2157
      %vm2159 = vweird.f32 %v2034
      %vm2160 = vweird.f32 %v2154
      %vm2161 = vmor %vm2159, %vm2160
      %v2162 = vsel %vm2161, %v2154, %v2158
      %v2163 = vand.u32 2147483647, %v2034
      %vm2164 = vcmp.eq.f32.partialorder %v2163, 8.507059e+37
      %v2165 = vand.u32 %v2034, 2147483648
      %v2166 = vor.u32 1.1754944e-38, %v2165
      %v2167 = vsel %vm2164, %v2166, %v2162
      %v2168 = vmul.f32 1.0, %v2167
      %v2169 = vrcp.pop %v2035
      %v2170 = vmul.f32 %v2035, %v2169
      %v2171 = vsub.f32 1.0, %v2170
      %v2172 = vmul.f32 %v2169, %v2171
      %v2173 = vadd.f32 %v2169, %v2172
      %vm2174 = vweird.f32 %v2035
      %vm2175 = vweird.f32 %v2169
      %vm2176 = vmor %vm2174, %vm2175
      %v2177 = vsel %vm2176, %v2169, %v2173
      %v2178 = vand.u32 2147483647, %v2035
      %vm2179 = vcmp.eq.f32.partialorder %v2178, 8.507059e+37
      %v2180 = vand.u32 %v2035, 2147483648
      %v2181 = vor.u32 1.1754944e-38, %v2180
      %v2182 = vsel %vm2179, %v2181, %v2177
      %v2183 = vmul.f32 1.0, %v2182
      %v2184 = vrcp.pop %v2036
      %v2185 = vmul.f32 %v2036, %v2184
      %v2186 = vsub.f32 1.0, %v2185
      %v2187 = vmul.f32 %v2184, %v2186
      %v2188 = vadd.f32 %v2184, %v2187
      %vm2189 = vweird.f32 %v2036
      %vm2190 = vweird.f32 %v2184
      %vm2191 = vmor %vm2189, %vm2190
      %v2192 = vsel %vm2191, %v2184, %v2188
      %v2193 = vand.u32 2147483647, %v2036
      %vm2194 = vcmp.eq.f32.partialorder %v2193, 8.507059e+37
      %v2195 = vand.u32 %v2036, 2147483648
      %v2196 = vor.u32 1.1754944e-38, %v2195
      %v2197 = vsel %vm2194, %v2196, %v2192
      %v2198 = vmul.f32 1.0, %v2197
      %v2199 = vrcp.pop %v2037
      %v2200 = vmul.f32 %v2037, %v2199
      %v2201 = vsub.f32 1.0, %v2200
      %v2202 = vmul.f32 %v2199, %v2201
      %v2203 = vadd.f32 %v2199, %v2202
      %vm2204 = vweird.f32 %v2037
      %vm2205 = vweird.f32 %v2199
      %vm2206 = vmor %vm2204, %vm2205
      %v2207 = vsel %vm2206, %v2199, %v2203
      %v2208 = vand.u32 2147483647, %v2037
      %vm2209 = vcmp.eq.f32.partialorder %v2208, 8.507059e+37
      %v2210 = vand.u32 %v2037, 2147483648
      %v2211 = vor.u32 1.1754944e-38, %v2210
      %v2212 = vsel %vm2209, %v2211, %v2207
      %v2213 = vmul.f32 1.0, %v2212
      %v2214 = vrcp.pop %v2038
      %v2215 = vmul.f32 %v2038, %v2214
      %v2216 = vsub.f32 1.0, %v2215
      %v2217 = vmul.f32 %v2214, %v2216
      %v2218 = vadd.f32 %v2214, %v2217
      %vm2219 = vweird.f32 %v2038
      %vm2220 = vweird.f32 %v2214
      %vm2221 = vmor %vm2219, %vm2220
      %v2222 = vsel %vm2221, %v2214, %v2218
      %v2223 = vand.u32 2147483647, %v2038
      %vm2224 = vcmp.eq.f32.partialorder %v2223, 8.507059e+37
      %v2225 = vand.u32 %v2038, 2147483648
      %v2226 = vor.u32 1.1754944e-38, %v2225
      %v2227 = vsel %vm2224, %v2226, %v2222
      %v2228 = vmul.f32 1.0, %v2227
      %v2229 = vrcp.pop %v2039
      %v2230 = vmul.f32 %v2039, %v2229
      %v2231 = vsub.f32 1.0, %v2230
      %v2232 = vmul.f32 %v2229, %v2231
      %v2233 = vadd.f32 %v2229, %v2232
      %vm2234 = vweird.f32 %v2039
      %vm2235 = vweird.f32 %v2229
      %vm2236 = vmor %vm2234, %vm2235
      %v2237 = vsel %vm2236, %v2229, %v2233
      %v2238 = vand.u32 2147483647, %v2039
      %vm2239 = vcmp.eq.f32.partialorder %v2238, 8.507059e+37
      %v2240 = vand.u32 %v2039, 2147483648
      %v2241 = vor.u32 1.1754944e-38, %v2240
      %v2242 = vsel %vm2239, %v2241, %v2237
      %v2243 = vmul.f32 1.0, %v2242
      %v2244 = vrcp.pop %v2040
      %v2245 = vmul.f32 %v2040, %v2244
      %v2246 = vsub.f32 1.0, %v2245
      %v2247 = vmul.f32 %v2244, %v2246
      %v2248 = vadd.f32 %v2244, %v2247
      %vm2249 = vweird.f32 %v2040
      %vm2250 = vweird.f32 %v2244
      %vm2251 = vmor %vm2249, %vm2250
      %v2252 = vsel %vm2251, %v2244, %v2248
      %v2253 = vand.u32 2147483647, %v2040
      %vm2254 = vcmp.eq.f32.partialorder %v2253, 8.507059e+37
      %v2255 = vand.u32 %v2040, 2147483648
      %v2256 = vor.u32 1.1754944e-38, %v2255
      %v2257 = vsel %vm2254, %v2256, %v2252
      %v2258 = vmul.f32 1.0, %v2257
      %v2259 = vrcp.pop %v2041
      %v2260 = vmul.f32 %v2041, %v2259
      %v2261 = vsub.f32 1.0, %v2260
      %v2262 = vmul.f32 %v2259, %v2261
      %v2263 = vadd.f32 %v2259, %v2262
      %vm2264 = vweird.f32 %v2041
      %vm2265 = vweird.f32 %v2259
      %vm2266 = vmor %vm2264, %vm2265
      %v2267 = vsel %vm2266, %v2259, %v2263
      %v2268 = vand.u32 2147483647, %v2041
      %vm2269 = vcmp.eq.f32.partialorder %v2268, 8.507059e+37
      %v2270 = vand.u32 %v2041, 2147483648
      %v2271 = vor.u32 1.1754944e-38, %v2270
      %v2272 = vsel %vm2269, %v2271, %v2267
      %v2273 = vmul.f32 1.0, %v2272
      %v2274 = vrcp.pop %v2042
      %v2275 = vmul.f32 %v2042, %v2274
      %v2276 = vsub.f32 1.0, %v2275
      %v2277 = vmul.f32 %v2274, %v2276
      %v2278 = vadd.f32 %v2274, %v2277
      %vm2279 = vweird.f32 %v2042
      %vm2280 = vweird.f32 %v2274
      %vm2281 = vmor %vm2279, %vm2280
      %v2282 = vsel %vm2281, %v2274, %v2278
      %v2283 = vand.u32 2147483647, %v2042
      %vm2284 = vcmp.eq.f32.partialorder %v2283, 8.507059e+37
      %v2285 = vand.u32 %v2042, 2147483648
      %v2286 = vor.u32 1.1754944e-38, %v2285
      %v2287 = vsel %vm2284, %v2286, %v2282
      %v2288 = vmul.f32 1.0, %v2287
      %v2289 = vrcp.pop %v2043
      %v2290 = vmul.f32 %v2043, %v2289
      %v2291 = vsub.f32 1.0, %v2290
      %v2292 = vmul.f32 %v2289, %v2291
      %v2293 = vadd.f32 %v2289, %v2292
      %vm2294 = vweird.f32 %v2043
      %vm2295 = vweird.f32 %v2289
      %vm2296 = vmor %vm2294, %vm2295
      %v2297 = vsel %vm2296, %v2289, %v2293
      %v2298 = vand.u32 2147483647, %v2043
      %vm2299 = vcmp.eq.f32.partialorder %v2298, 8.507059e+37
      %v2300 = vand.u32 %v2043, 2147483648
      %v2301 = vor.u32 1.1754944e-38, %v2300
      %v2302 = vsel %vm2299, %v2301, %v2297
      %v2303 = vmul.f32 1.0, %v2302
      %v2304 = vrcp.pop %v2044
      %v2305 = vmul.f32 %v2044, %v2304
      %v2306 = vsub.f32 1.0, %v2305
      %v2307 = vmul.f32 %v2304, %v2306
      %v2308 = vadd.f32 %v2304, %v2307
      %vm2309 = vweird.f32 %v2044
      %vm2310 = vweird.f32 %v2304
      %vm2311 = vmor %vm2309, %vm2310
      %v2312 = vsel %vm2311, %v2304, %v2308
      %v2313 = vand.u32 2147483647, %v2044
      %vm2314 = vcmp.eq.f32.partialorder %v2313, 8.507059e+37
      %v2315 = vand.u32 %v2044, 2147483648
      %v2316 = vor.u32 1.1754944e-38, %v2315
      %v2317 = vsel %vm2314, %v2316, %v2312
      %v2318 = vmul.f32 1.0, %v2317
      %v2319 = vrcp.pop %v2045
      %v2320 = vmul.f32 %v2045, %v2319
      %v2321 = vsub.f32 1.0, %v2320
      %v2322 = vmul.f32 %v2319, %v2321
      %v2323 = vadd.f32 %v2319, %v2322
      %vm2324 = vweird.f32 %v2045
      %vm2325 = vweird.f32 %v2319
      %vm2326 = vmor %vm2324, %vm2325
      %v2327 = vsel %vm2326, %v2319, %v2323
      %v2328 = vand.u32 2147483647, %v2045
      %vm2329 = vcmp.eq.f32.partialorder %v2328, 8.507059e+37
      %v2330 = vand.u32 %v2045, 2147483648
      %v2331 = vor.u32 1.1754944e-38, %v2330
      %v2332 = vsel %vm2329, %v2331, %v2327
      %v2333 = vmul.f32 1.0, %v2332
      %v2334 = vrcp.pop %v2046
      %v2335 = vmul.f32 %v2046, %v2334
      %v2336 = vsub.f32 1.0, %v2335
      %v2337 = vmul.f32 %v2334, %v2336
      %v2338 = vadd.f32 %v2334, %v2337
      %vm2339 = vweird.f32 %v2046
      %vm2340 = vweird.f32 %v2334
      %vm2341 = vmor %vm2339, %vm2340
      %v2342 = vsel %vm2341, %v2334, %v2338
      %v2343 = vand.u32 2147483647, %v2046
      %vm2344 = vcmp.eq.f32.partialorder %v2343, 8.507059e+37
      %v2345 = vand.u32 %v2046, 2147483648
      %v2346 = vor.u32 1.1754944e-38, %v2345
      %v2347 = vsel %vm2344, %v2346, %v2342
      %v2348 = vmul.f32 1.0, %v2347
      %v2349 = vrcp.pop %v2047
      %v2350 = vmul.f32 %v2047, %v2349
      %v2351 = vsub.f32 1.0, %v2350
      %v2352 = vmul.f32 %v2349, %v2351
      %v2353 = vadd.f32 %v2349, %v2352
      %vm2354 = vweird.f32 %v2047
      %vm2355 = vweird.f32 %v2349
      %vm2356 = vmor %vm2354, %vm2355
      %v2357 = vsel %vm2356, %v2349, %v2353
      %v2358 = vand.u32 2147483647, %v2047
      %vm2359 = vcmp.eq.f32.partialorder %v2358, 8.507059e+37
      %v2360 = vand.u32 %v2047, 2147483648
      %v2361 = vor.u32 1.1754944e-38, %v2360
      %v2362 = vsel %vm2359, %v2361, %v2357
      %v2363 = vmul.f32 1.0, %v2362
      %v2364 = vrcp.pop %v2048
      %v2365 = vmul.f32 %v2048, %v2364
      %v2366 = vsub.f32 1.0, %v2365
      %v2367 = vmul.f32 %v2364, %v2366
      %v2368 = vadd.f32 %v2364, %v2367
      %vm2369 = vweird.f32 %v2048
      %vm2370 = vweird.f32 %v2364
      %vm2371 = vmor %vm2369, %vm2370
      %v2372 = vsel %vm2371, %v2364, %v2368
      %v2373 = vand.u32 2147483647, %v2048
      %vm2374 = vcmp.eq.f32.partialorder %v2373, 8.507059e+37
      %v2375 = vand.u32 %v2048, 2147483648
      %v2376 = vor.u32 1.1754944e-38, %v2375
      %v2377 = vsel %vm2374, %v2376, %v2372
      %v2378 = vmul.f32 1.0, %v2377
      %v2379 = vrcp.pop %v2049
      %v2380 = vmul.f32 %v2049, %v2379
      %v2381 = vsub.f32 1.0, %v2380
      %v2382 = vmul.f32 %v2379, %v2381
      %v2383 = vadd.f32 %v2379, %v2382
      %vm2384 = vweird.f32 %v2049
      %vm2385 = vweird.f32 %v2379
      %vm2386 = vmor %vm2384, %vm2385
      %v2387 = vsel %vm2386, %v2379, %v2383
      %v2388 = vand.u32 2147483647, %v2049
      %vm2389 = vcmp.eq.f32.partialorder %v2388, 8.507059e+37
      %v2390 = vand.u32 %v2049, 2147483648
      %v2391 = vor.u32 1.1754944e-38, %v2390
      %v2392 = vsel %vm2389, %v2391, %v2387
      %v2393 = vmul.f32 1.0, %v2392
      %v2394 = vrcp.pop %v2050
      %v2395 = vmul.f32 %v2050, %v2394
      %v2396 = vsub.f32 1.0, %v2395
      %v2397 = vmul.f32 %v2394, %v2396
      %v2398 = vadd.f32 %v2394, %v2397
      %vm2399 = vweird.f32 %v2050
      %vm2400 = vweird.f32 %v2394
      %vm2401 = vmor %vm2399, %vm2400
      %v2402 = vsel %vm2401, %v2394, %v2398
      %v2403 = vand.u32 2147483647, %v2050
      %vm2404 = vcmp.eq.f32.partialorder %v2403, 8.507059e+37
      %v2405 = vand.u32 %v2050, 2147483648
      %v2406 = vor.u32 1.1754944e-38, %v2405
      %v2407 = vsel %vm2404, %v2406, %v2402
      %v2408 = vmul.f32 1.0, %v2407
      %v2409 = vrcp.pop %v2051
      %v2410 = vmul.f32 %v2051, %v2409
      %v2411 = vsub.f32 1.0, %v2410
      %v2412 = vmul.f32 %v2409, %v2411
      %v2413 = vadd.f32 %v2409, %v2412
      %vm2414 = vweird.f32 %v2051
      %vm2415 = vweird.f32 %v2409
      %vm2416 = vmor %vm2414, %vm2415
      %v2417 = vsel %vm2416, %v2409, %v2413
      %v2418 = vand.u32 2147483647, %v2051
      %vm2419 = vcmp.eq.f32.partialorder %v2418, 8.507059e+37
      %v2420 = vand.u32 %v2051, 2147483648
      %v2421 = vor.u32 1.1754944e-38, %v2420
      %v2422 = vsel %vm2419, %v2421, %v2417
      %v2423 = vmul.f32 1.0, %v2422
      %v2424 = vrcp.pop %v2052
      %v2425 = vmul.f32 %v2052, %v2424
      %v2426 = vsub.f32 1.0, %v2425
      %v2427 = vmul.f32 %v2424, %v2426
      %v2428 = vadd.f32 %v2424, %v2427
      %vm2429 = vweird.f32 %v2052
      %vm2430 = vweird.f32 %v2424
      %vm2431 = vmor %vm2429, %vm2430
      %v2432 = vsel %vm2431, %v2424, %v2428
      %v2433 = vand.u32 2147483647, %v2052
      %vm2434 = vcmp.eq.f32.partialorder %v2433, 8.507059e+37
      %v2435 = vand.u32 %v2052, 2147483648
      %v2436 = vor.u32 1.1754944e-38, %v2435
      %v2437 = vsel %vm2434, %v2436, %v2432
      %v2438 = vmul.f32 1.0, %v2437
      %v2439 = vrcp.pop %v2053
      %v2440 = vmul.f32 %v2053, %v2439
      %v2441 = vsub.f32 1.0, %v2440
      %v2442 = vmul.f32 %v2439, %v2441
      %v2443 = vadd.f32 %v2439, %v2442
      %vm2444 = vweird.f32 %v2053
      %vm2445 = vweird.f32 %v2439
      %vm2446 = vmor %vm2444, %vm2445
      %v2447 = vsel %vm2446, %v2439, %v2443
      %v2448 = vand.u32 2147483647, %v2053
      %vm2449 = vcmp.eq.f32.partialorder %v2448, 8.507059e+37
      %v2450 = vand.u32 %v2053, 2147483648
      %v2451 = vor.u32 1.1754944e-38, %v2450
      %v2452 = vsel %vm2449, %v2451, %v2447
      %v2453 = vmul.f32 1.0, %v2452
      %v2454 = vrcp.pop %v2054
      %v2455 = vmul.f32 %v2054, %v2454
      %v2456 = vsub.f32 1.0, %v2455
      %v2457 = vmul.f32 %v2454, %v2456
      %v2458 = vadd.f32 %v2454, %v2457
      %vm2459 = vweird.f32 %v2054
      %vm2460 = vweird.f32 %v2454
      %vm2461 = vmor %vm2459, %vm2460
      %v2462 = vsel %vm2461, %v2454, %v2458
      %v2463 = vand.u32 2147483647, %v2054
      %vm2464 = vcmp.eq.f32.partialorder %v2463, 8.507059e+37
      %v2465 = vand.u32 %v2054, 2147483648
      %v2466 = vor.u32 1.1754944e-38, %v2465
      %v2467 = vsel %vm2464, %v2466, %v2462
      %v2468 = vmul.f32 1.0, %v2467
      %v2469 = vrcp.pop %v2055
      %v2470 = vmul.f32 %v2055, %v2469
      %v2471 = vsub.f32 1.0, %v2470
      %v2472 = vmul.f32 %v2469, %v2471
      %v2473 = vadd.f32 %v2469, %v2472
      %vm2474 = vweird.f32 %v2055
      %vm2475 = vweird.f32 %v2469
      %vm2476 = vmor %vm2474, %vm2475
      %v2477 = vsel %vm2476, %v2469, %v2473
      %v2478 = vand.u32 2147483647, %v2055
      %vm2479 = vcmp.eq.f32.partialorder %v2478, 8.507059e+37
      %v2480 = vand.u32 %v2055, 2147483648
      %v2481 = vor.u32 1.1754944e-38, %v2480
      %v2482 = vsel %vm2479, %v2481, %v2477
      %v2483 = vmul.f32 1.0, %v2482
      %v2484 = vrcp.pop %v2056
      %v2485 = vmul.f32 %v2056, %v2484
      %v2486 = vsub.f32 1.0, %v2485
      %v2487 = vmul.f32 %v2484, %v2486
      %v2488 = vadd.f32 %v2484, %v2487
      %vm2489 = vweird.f32 %v2056
      %vm2490 = vweird.f32 %v2484
      %vm2491 = vmor %vm2489, %vm2490
      %v2492 = vsel %vm2491, %v2484, %v2488
      %v2493 = vand.u32 2147483647, %v2056
      %vm2494 = vcmp.eq.f32.partialorder %v2493, 8.507059e+37
      %v2495 = vand.u32 %v2056, 2147483648
      %v2496 = vor.u32 1.1754944e-38, %v2495
      %v2497 = vsel %vm2494, %v2496, %v2492
      %v2498 = vmul.f32 1.0, %v2497
      %v2499 = vrcp.pop %v2057
      %v2500 = vmul.f32 %v2057, %v2499
      %v2501 = vsub.f32 1.0, %v2500
      %v2502 = vmul.f32 %v2499, %v2501
      %v2503 = vadd.f32 %v2499, %v2502
      %vm2504 = vweird.f32 %v2057
      %vm2505 = vweird.f32 %v2499
      %vm2506 = vmor %vm2504, %vm2505
      %v2507 = vsel %vm2506, %v2499, %v2503
      %v2508 = vand.u32 2147483647, %v2057
      %vm2509 = vcmp.eq.f32.partialorder %v2508, 8.507059e+37
      %v2510 = vand.u32 %v2057, 2147483648
      %v2511 = vor.u32 1.1754944e-38, %v2510
      %v2512 = vsel %vm2509, %v2511, %v2507
      %v2513 = vmul.f32 1.0, %v2512
      %v2514 = vrcp.pop %v2058
      %v2515 = vmul.f32 %v2058, %v2514
      %v2516 = vsub.f32 1.0, %v2515
      %v2517 = vmul.f32 %v2514, %v2516
      %v2518 = vadd.f32 %v2514, %v2517
      %vm2519 = vweird.f32 %v2058
      %vm2520 = vweird.f32 %v2514
      %vm2521 = vmor %vm2519, %vm2520
      %v2522 = vsel %vm2521, %v2514, %v2518
      %v2523 = vand.u32 2147483647, %v2058
      %vm2524 = vcmp.eq.f32.partialorder %v2523, 8.507059e+37
      %v2525 = vand.u32 %v2058, 2147483648
      %v2526 = vor.u32 1.1754944e-38, %v2525
      %v2527 = vsel %vm2524, %v2526, %v2522
      %v2528 = vmul.f32 1.0, %v2527
      %v2529 = vrcp.pop %v2059
      %v2530 = vmul.f32 %v2059, %v2529
      %v2531 = vsub.f32 1.0, %v2530
      %v2532 = vmul.f32 %v2529, %v2531
      %v2533 = vadd.f32 %v2529, %v2532
      %vm2534 = vweird.f32 %v2059
      %vm2535 = vweird.f32 %v2529
      %vm2536 = vmor %vm2534, %vm2535
      %v2537 = vsel %vm2536, %v2529, %v2533
      %v2538 = vand.u32 2147483647, %v2059
      %vm2539 = vcmp.eq.f32.partialorder %v2538, 8.507059e+37
      %v2540 = vand.u32 %v2059, 2147483648
      %v2541 = vor.u32 1.1754944e-38, %v2540
      %v2542 = vsel %vm2539, %v2541, %v2537
      %v2543 = vmul.f32 1.0, %v2542
      %v2544 = vrcp.pop %v2060
      %v2545 = vmul.f32 %v2060, %v2544
      %v2546 = vsub.f32 1.0, %v2545
      %v2547 = vmul.f32 %v2544, %v2546
      %v2548 = vadd.f32 %v2544, %v2547
      %vm2549 = vweird.f32 %v2060
      %vm2550 = vweird.f32 %v2544
      %vm2551 = vmor %vm2549, %vm2550
      %v2552 = vsel %vm2551, %v2544, %v2548
      %v2553 = vand.u32 2147483647, %v2060
      %vm2554 = vcmp.eq.f32.partialorder %v2553, 8.507059e+37
      %v2555 = vand.u32 %v2060, 2147483648
      %v2556 = vor.u32 1.1754944e-38, %v2555
      %v2557 = vsel %vm2554, %v2556, %v2552
      %v2558 = vmul.f32 1.0, %v2557
      %v2559 = vrcp.pop %v2061
      %v2560 = vmul.f32 %v2061, %v2559
      %v2561 = vsub.f32 1.0, %v2560
      %v2562 = vmul.f32 %v2559, %v2561
      %v2563 = vadd.f32 %v2559, %v2562
      %vm2564 = vweird.f32 %v2061
      %vm2565 = vweird.f32 %v2559
      %vm2566 = vmor %vm2564, %vm2565
      %v2567 = vsel %vm2566, %v2559, %v2563
      %v2568 = vand.u32 2147483647, %v2061
      %vm2569 = vcmp.eq.f32.partialorder %v2568, 8.507059e+37
      %v2570 = vand.u32 %v2061, 2147483648
      %v2571 = vor.u32 1.1754944e-38, %v2570
      %v2572 = vsel %vm2569, %v2571, %v2567
      %v2573 = vmul.f32 1.0, %v2572
      %v2574 = vrcp.pop %v2062
      %v2575 = vmul.f32 %v2062, %v2574
      %v2576 = vsub.f32 1.0, %v2575
      %v2577 = vmul.f32 %v2574, %v2576
      %v2578 = vadd.f32 %v2574, %v2577
      %vm2579 = vweird.f32 %v2062
      %vm2580 = vweird.f32 %v2574
      %vm2581 = vmor %vm2579, %vm2580
      %v2582 = vsel %vm2581, %v2574, %v2578
      %v2583 = vand.u32 2147483647, %v2062
      %vm2584 = vcmp.eq.f32.partialorder %v2583, 8.507059e+37
      %v2585 = vand.u32 %v2062, 2147483648
      %v2586 = vor.u32 1.1754944e-38, %v2585
      %v2587 = vsel %vm2584, %v2586, %v2582
      %v2588 = vmul.f32 1.0, %v2587
      %v2589 = vrcp.pop %v2063
      %v2590 = vmul.f32 %v2063, %v2589
      %v2591 = vsub.f32 1.0, %v2590
      %v2592 = vmul.f32 %v2589, %v2591
      %v2593 = vadd.f32 %v2589, %v2592
      %vm2594 = vweird.f32 %v2063
      %vm2595 = vweird.f32 %v2589
      %vm2596 = vmor %vm2594, %vm2595
      %v2597 = vsel %vm2596, %v2589, %v2593
      %v2598 = vand.u32 2147483647, %v2063
      %vm2599 = vcmp.eq.f32.partialorder %v2598, 8.507059e+37
      %v2600 = vand.u32 %v2063, 2147483648
      %v2601 = vor.u32 1.1754944e-38, %v2600
      %v2602 = vsel %vm2599, %v2601, %v2597
      %v2603 = vmul.f32 1.0, %v2602
      %v2604 = vrcp.pop %v2064
      %v2605 = vmul.f32 %v2064, %v2604
      %v2606 = vsub.f32 1.0, %v2605
      %v2607 = vmul.f32 %v2604, %v2606
      %v2608 = vadd.f32 %v2604, %v2607
      %vm2609 = vweird.f32 %v2064
      %vm2610 = vweird.f32 %v2604
      %vm2611 = vmor %vm2609, %vm2610
      %v2612 = vsel %vm2611, %v2604, %v2608
      %v2613 = vand.u32 2147483647, %v2064
      %vm2614 = vcmp.eq.f32.partialorder %v2613, 8.507059e+37
      %v2615 = vand.u32 %v2064, 2147483648
      %v2616 = vor.u32 1.1754944e-38, %v2615
      %v2617 = vsel %vm2614, %v2616, %v2612
      %v2618 = vmul.f32 1.0, %v2617
      %v2619 = vrcp.pop %v2065
      %v2620 = vmul.f32 %v2065, %v2619
      %v2621 = vsub.f32 1.0, %v2620
      %v2622 = vmul.f32 %v2619, %v2621
      %v2623 = vadd.f32 %v2619, %v2622
      %vm2624 = vweird.f32 %v2065
      %vm2625 = vweird.f32 %v2619
      %vm2626 = vmor %vm2624, %vm2625
      %v2627 = vsel %vm2626, %v2619, %v2623
      %v2628 = vand.u32 2147483647, %v2065
      %vm2629 = vcmp.eq.f32.partialorder %v2628, 8.507059e+37
      %v2630 = vand.u32 %v2065, 2147483648
      %v2631 = vor.u32 1.1754944e-38, %v2630
      %v2632 = vsel %vm2629, %v2631, %v2627
      %v2633 = vmul.f32 1.0, %v2632
      %v2634 = vrcp.pop %v2066
      %v2635 = vmul.f32 %v2066, %v2634
      %v2636 = vsub.f32 1.0, %v2635
      %v2637 = vmul.f32 %v2634, %v2636
      %v2638 = vadd.f32 %v2634, %v2637
      %vm2639 = vweird.f32 %v2066
      %vm2640 = vweird.f32 %v2634
      %vm2641 = vmor %vm2639, %vm2640
      %v2642 = vsel %vm2641, %v2634, %v2638
      %v2643 = vand.u32 2147483647, %v2066
      %vm2644 = vcmp.eq.f32.partialorder %v2643, 8.507059e+37
      %v2645 = vand.u32 %v2066, 2147483648
      %v2646 = vor.u32 1.1754944e-38, %v2645
      %v2647 = vsel %vm2644, %v2646, %v2642
      %v2648 = vmul.f32 1.0, %v2647
      %v2649 = vrcp.pop %v2067
      %v2650 = vmul.f32 %v2067, %v2649
      %v2651 = vsub.f32 1.0, %v2650
      %v2652 = vmul.f32 %v2649, %v2651
      %v2653 = vadd.f32 %v2649, %v2652
      %vm2654 = vweird.f32 %v2067
      %vm2655 = vweird.f32 %v2649
      %vm2656 = vmor %vm2654, %vm2655
      %v2657 = vsel %vm2656, %v2649, %v2653
      %v2658 = vand.u32 2147483647, %v2067
      %vm2659 = vcmp.eq.f32.partialorder %v2658, 8.507059e+37
      %v2660 = vand.u32 %v2067, 2147483648
      %v2661 = vor.u32 1.1754944e-38, %v2660
      %v2662 = vsel %vm2659, %v2661, %v2657
      %v2663 = vmul.f32 1.0, %v2662
      %v2664 = vrcp.pop %v2068
      %v2665 = vmul.f32 %v2068, %v2664
      %v2666 = vsub.f32 1.0, %v2665
      %v2667 = vmul.f32 %v2664, %v2666
      %v2668 = vadd.f32 %v2664, %v2667
      %vm2669 = vweird.f32 %v2068
      %vm2670 = vweird.f32 %v2664
      %vm2671 = vmor %vm2669, %vm2670
      %v2672 = vsel %vm2671, %v2664, %v2668
      %v2673 = vand.u32 2147483647, %v2068
      %vm2674 = vcmp.eq.f32.partialorder %v2673, 8.507059e+37
      %v2675 = vand.u32 %v2068, 2147483648
      %v2676 = vor.u32 1.1754944e-38, %v2675
      %v2677 = vsel %vm2674, %v2676, %v2672
      %v2678 = vmul.f32 1.0, %v2677
      %v2679 = vrcp.pop %v2069
      %v2680 = vmul.f32 %v2069, %v2679
      %v2681 = vsub.f32 1.0, %v2680
      %v2682 = vmul.f32 %v2679, %v2681
      %v2683 = vadd.f32 %v2679, %v2682
      %vm2684 = vweird.f32 %v2069
      %vm2685 = vweird.f32 %v2679
      %vm2686 = vmor %vm2684, %vm2685
      %v2687 = vsel %vm2686, %v2679, %v2683
      %v2688 = vand.u32 2147483647, %v2069
      %vm2689 = vcmp.eq.f32.partialorder %v2688, 8.507059e+37
      %v2690 = vand.u32 %v2069, 2147483648
      %v2691 = vor.u32 1.1754944e-38, %v2690
      %v2692 = vsel %vm2689, %v2691, %v2687
      %v2693 = vmul.f32 1.0, %v2692
      %v2694 = vrcp.pop %v2070
      %v2695 = vmul.f32 %v2070, %v2694
      %v2696 = vsub.f32 1.0, %v2695
      %v2697 = vmul.f32 %v2694, %v2696
      %v2698 = vadd.f32 %v2694, %v2697
      %vm2699 = vweird.f32 %v2070
      %vm2700 = vweird.f32 %v2694
      %vm2701 = vmor %vm2699, %vm2700
      %v2702 = vsel %vm2701, %v2694, %v2698
      %v2703 = vand.u32 2147483647, %v2070
      %vm2704 = vcmp.eq.f32.partialorder %v2703, 8.507059e+37
      %v2705 = vand.u32 %v2070, 2147483648
      %v2706 = vor.u32 1.1754944e-38, %v2705
      %v2707 = vsel %vm2704, %v2706, %v2702
      %v2708 = vmul.f32 1.0, %v2707
      %v2709 = vrcp.pop %v2071
      %v2710 = vmul.f32 %v2071, %v2709
      %v2711 = vsub.f32 1.0, %v2710
      %v2712 = vmul.f32 %v2709, %v2711
      %v2713 = vadd.f32 %v2709, %v2712
      %vm2714 = vweird.f32 %v2071
      %vm2715 = vweird.f32 %v2709
      %vm2716 = vmor %vm2714, %vm2715
      %v2717 = vsel %vm2716, %v2709, %v2713
      %v2718 = vand.u32 2147483647, %v2071
      %vm2719 = vcmp.eq.f32.partialorder %v2718, 8.507059e+37
      %v2720 = vand.u32 %v2071, 2147483648
      %v2721 = vor.u32 1.1754944e-38, %v2720
      %v2722 = vsel %vm2719, %v2721, %v2717
      %v2723 = vmul.f32 1.0, %v2722
      %v2724 = vrcp.pop %v2072
      %v2725 = vmul.f32 %v2072, %v2724
      %v2726 = vsub.f32 1.0, %v2725
      %v2727 = vmul.f32 %v2724, %v2726
      %v2728 = vadd.f32 %v2724, %v2727
      %vm2729 = vweird.f32 %v2072
      %vm2730 = vweird.f32 %v2724
      %vm2731 = vmor %vm2729, %vm2730
      %v2732 = vsel %vm2731, %v2724, %v2728
      %v2733 = vand.u32 2147483647, %v2072
      %vm2734 = vcmp.eq.f32.partialorder %v2733, 8.507059e+37
      %v2735 = vand.u32 %v2072, 2147483648
      %v2736 = vor.u32 1.1754944e-38, %v2735
      %v2737 = vsel %vm2734, %v2736, %v2732
      %v2738 = vmul.f32 1.0, %v2737
      %v2739 = vrcp.pop %v2073
      %v2740 = vmul.f32 %v2073, %v2739
      %v2741 = vsub.f32 1.0, %v2740
      %v2742 = vmul.f32 %v2739, %v2741
      %v2743 = vadd.f32 %v2739, %v2742
      %vm2744 = vweird.f32 %v2073
      %vm2745 = vweird.f32 %v2739
      %vm2746 = vmor %vm2744, %vm2745
      %v2747 = vsel %vm2746, %v2739, %v2743
      %v2748 = vand.u32 2147483647, %v2073
      %vm2749 = vcmp.eq.f32.partialorder %v2748, 8.507059e+37
      %v2750 = vand.u32 %v2073, 2147483648
      %v2751 = vor.u32 1.1754944e-38, %v2750
      %v2752 = vsel %vm2749, %v2751, %v2747
      %v2753 = vmul.f32 1.0, %v2752
      %v2754 = vrcp.pop %v2074
      %v2755 = vmul.f32 %v2074, %v2754
      %v2756 = vsub.f32 1.0, %v2755
      %v2757 = vmul.f32 %v2754, %v2756
      %v2758 = vadd.f32 %v2754, %v2757
      %vm2759 = vweird.f32 %v2074
      %vm2760 = vweird.f32 %v2754
      %vm2761 = vmor %vm2759, %vm2760
      %v2762 = vsel %vm2761, %v2754, %v2758
      %v2763 = vand.u32 2147483647, %v2074
      %vm2764 = vcmp.eq.f32.partialorder %v2763, 8.507059e+37
      %v2765 = vand.u32 %v2074, 2147483648
      %v2766 = vor.u32 1.1754944e-38, %v2765
      %v2767 = vsel %vm2764, %v2766, %v2762
      %v2768 = vmul.f32 1.0, %v2767
      %v2769 = vrcp.pop %v2075
      %v2770 = vmul.f32 %v2075, %v2769
      %v2771 = vsub.f32 1.0, %v2770
      %v2772 = vmul.f32 %v2769, %v2771
      %v2773 = vadd.f32 %v2769, %v2772
      %vm2774 = vweird.f32 %v2075
      %vm2775 = vweird.f32 %v2769
      %vm2776 = vmor %vm2774, %vm2775
      %v2777 = vsel %vm2776, %v2769, %v2773
      %v2778 = vand.u32 2147483647, %v2075
      %vm2779 = vcmp.eq.f32.partialorder %v2778, 8.507059e+37
      %v2780 = vand.u32 %v2075, 2147483648
      %v2781 = vor.u32 1.1754944e-38, %v2780
      %v2782 = vsel %vm2779, %v2781, %v2777
      %v2783 = vmul.f32 1.0, %v2782
      %v2784 = vrcp.pop %v2076
      %v2785 = vmul.f32 %v2076, %v2784
      %v2786 = vsub.f32 1.0, %v2785
      %v2787 = vmul.f32 %v2784, %v2786
      %v2788 = vadd.f32 %v2784, %v2787
      %vm2789 = vweird.f32 %v2076
      %vm2790 = vweird.f32 %v2784
      %vm2791 = vmor %vm2789, %vm2790
      %v2792 = vsel %vm2791, %v2784, %v2788
      %v2793 = vand.u32 2147483647, %v2076
      %vm2794 = vcmp.eq.f32.partialorder %v2793, 8.507059e+37
      %v2795 = vand.u32 %v2076, 2147483648
      %v2796 = vor.u32 1.1754944e-38, %v2795
      %v2797 = vsel %vm2794, %v2796, %v2792
      %v2798 = vmul.f32 1.0, %v2797
      %v2799 = vrcp.pop %v2077
      %v2800 = vmul.f32 %v2077, %v2799
      %v2801 = vsub.f32 1.0, %v2800
      %v2802 = vmul.f32 %v2799, %v2801
      %v2803 = vadd.f32 %v2799, %v2802
      %vm2804 = vweird.f32 %v2077
      %vm2805 = vweird.f32 %v2799
      %vm2806 = vmor %vm2804, %vm2805
      %v2807 = vsel %vm2806, %v2799, %v2803
      %v2808 = vand.u32 2147483647, %v2077
      %vm2809 = vcmp.eq.f32.partialorder %v2808, 8.507059e+37
      %v2810 = vand.u32 %v2077, 2147483648
      %v2811 = vor.u32 1.1754944e-38, %v2810
      %v2812 = vsel %vm2809, %v2811, %v2807
      %v2813 = vmul.f32 1.0, %v2812
      %v2814 = vrcp.pop %v2078
      %v2815 = vmul.f32 %v2078, %v2814
      %v2816 = vsub.f32 1.0, %v2815
      %v2817 = vmul.f32 %v2814, %v2816
      %v2818 = vadd.f32 %v2814, %v2817
      %vm2819 = vweird.f32 %v2078
      %vm2820 = vweird.f32 %v2814
      %vm2821 = vmor %vm2819, %vm2820
      %v2822 = vsel %vm2821, %v2814, %v2818
      %v2823 = vand.u32 2147483647, %v2078
      %vm2824 = vcmp.eq.f32.partialorder %v2823, 8.507059e+37
      %v2825 = vand.u32 %v2078, 2147483648
      %v2826 = vor.u32 1.1754944e-38, %v2825
      %v2827 = vsel %vm2824, %v2826, %v2822
      %v2828 = vmul.f32 1.0, %v2827
      %v2829 = vrcp.pop %v2079
      %v2830 = vmul.f32 %v2079, %v2829
      %v2831 = vsub.f32 1.0, %v2830
      %v2832 = vmul.f32 %v2829, %v2831
      %v2833 = vadd.f32 %v2829, %v2832
      %vm2834 = vweird.f32 %v2079
      %vm2835 = vweird.f32 %v2829
      %vm2836 = vmor %vm2834, %vm2835
      %v2837 = vsel %vm2836, %v2829, %v2833
      %v2838 = vand.u32 2147483647, %v2079
      %vm2839 = vcmp.eq.f32.partialorder %v2838, 8.507059e+37
      %v2840 = vand.u32 %v2079, 2147483648
      %v2841 = vor.u32 1.1754944e-38, %v2840
      %v2842 = vsel %vm2839, %v2841, %v2837
      %v2843 = vmul.f32 1.0, %v2842
      %v2844 = vrcp.pop %v2080
      %v2845 = vmul.f32 %v2080, %v2844
      %v2846 = vsub.f32 1.0, %v2845
      %v2847 = vmul.f32 %v2844, %v2846
      %v2848 = vadd.f32 %v2844, %v2847
      %vm2849 = vweird.f32 %v2080
      %vm2850 = vweird.f32 %v2844
      %vm2851 = vmor %vm2849, %vm2850
      %v2852 = vsel %vm2851, %v2844, %v2848
      %v2853 = vand.u32 2147483647, %v2080
      %vm2854 = vcmp.eq.f32.partialorder %v2853, 8.507059e+37
      %v2855 = vand.u32 %v2080, 2147483648
      %v2856 = vor.u32 1.1754944e-38, %v2855
      %v2857 = vsel %vm2854, %v2856, %v2852
      %v2858 = vmul.f32 1.0, %v2857
      %v2859 = vrcp.pop %v2081
      %v2860 = vmul.f32 %v2081, %v2859
      %v2861 = vsub.f32 1.0, %v2860
      %v2862 = vmul.f32 %v2859, %v2861
      %v2863 = vadd.f32 %v2859, %v2862
      %vm2864 = vweird.f32 %v2081
      %vm2865 = vweird.f32 %v2859
      %vm2866 = vmor %vm2864, %vm2865
      %v2867 = vsel %vm2866, %v2859, %v2863
      %v2868 = vand.u32 2147483647, %v2081
      %vm2869 = vcmp.eq.f32.partialorder %v2868, 8.507059e+37
      %v2870 = vand.u32 %v2081, 2147483648
      %v2871 = vor.u32 1.1754944e-38, %v2870
      %v2872 = vsel %vm2869, %v2871, %v2867
      %v2873 = vmul.f32 1.0, %v2872
      %v2874 = vrcp.pop %v2082
      %v2875 = vmul.f32 %v2082, %v2874
      %v2876 = vsub.f32 1.0, %v2875
      %v2877 = vmul.f32 %v2874, %v2876
      %v2878 = vadd.f32 %v2874, %v2877
      %vm2879 = vweird.f32 %v2082
      %vm2880 = vweird.f32 %v2874
      %vm2881 = vmor %vm2879, %vm2880
      %v2882 = vsel %vm2881, %v2874, %v2878
      %v2883 = vand.u32 2147483647, %v2082
      %vm2884 = vcmp.eq.f32.partialorder %v2883, 8.507059e+37
      %v2885 = vand.u32 %v2082, 2147483648
      %v2886 = vor.u32 1.1754944e-38, %v2885
      %v2887 = vsel %vm2884, %v2886, %v2882
      %v2888 = vmul.f32 1.0, %v2887
      %v2889 = vrcp.pop %v2083
      %v2890 = vmul.f32 %v2083, %v2889
      %v2891 = vsub.f32 1.0, %v2890
      %v2892 = vmul.f32 %v2889, %v2891
      %v2893 = vadd.f32 %v2889, %v2892
      %vm2894 = vweird.f32 %v2083
      %vm2895 = vweird.f32 %v2889
      %vm2896 = vmor %vm2894, %vm2895
      %v2897 = vsel %vm2896, %v2889, %v2893
      %v2898 = vand.u32 2147483647, %v2083
      %vm2899 = vcmp.eq.f32.partialorder %v2898, 8.507059e+37
      %v2900 = vand.u32 %v2083, 2147483648
      %v2901 = vor.u32 1.1754944e-38, %v2900
      %v2902 = vsel %vm2899, %v2901, %v2897
      %v2903 = vmul.f32 1.0, %v2902
      %v2904 = vrcp.pop %v2084
      %v2905 = vmul.f32 %v2084, %v2904
      %v2906 = vsub.f32 1.0, %v2905
      %v2907 = vmul.f32 %v2904, %v2906
      %v2908 = vadd.f32 %v2904, %v2907
      %vm2909 = vweird.f32 %v2084
      %vm2910 = vweird.f32 %v2904
      %vm2911 = vmor %vm2909, %vm2910
      %v2912 = vsel %vm2911, %v2904, %v2908
      %v2913 = vand.u32 2147483647, %v2084
      %vm2914 = vcmp.eq.f32.partialorder %v2913, 8.507059e+37
      %v2915 = vand.u32 %v2084, 2147483648
      %v2916 = vor.u32 1.1754944e-38, %v2915
      %v2917 = vsel %vm2914, %v2916, %v2912
      %v2918 = vmul.f32 1.0, %v2917
      %v2919 = vrcp.pop %v2085
      %v2920 = vmul.f32 %v2085, %v2919
      %v2921 = vsub.f32 1.0, %v2920
      %v2922 = vmul.f32 %v2919, %v2921
      %v2923 = vadd.f32 %v2919, %v2922
      %vm2924 = vweird.f32 %v2085
      %vm2925 = vweird.f32 %v2919
      %vm2926 = vmor %vm2924, %vm2925
      %v2927 = vsel %vm2926, %v2919, %v2923
      %v2928 = vand.u32 2147483647, %v2085
      %vm2929 = vcmp.eq.f32.partialorder %v2928, 8.507059e+37
      %v2930 = vand.u32 %v2085, 2147483648
      %v2931 = vor.u32 1.1754944e-38, %v2930
      %v2932 = vsel %vm2929, %v2931, %v2927
      %v2933 = vmul.f32 1.0, %v2932
      %v2934 = vrcp.pop %v2086
      %v2935 = vmul.f32 %v2086, %v2934
      %v2936 = vsub.f32 1.0, %v2935
      %v2937 = vmul.f32 %v2934, %v2936
      %v2938 = vadd.f32 %v2934, %v2937
      %vm2939 = vweird.f32 %v2086
      %vm2940 = vweird.f32 %v2934
      %vm2941 = vmor %vm2939, %vm2940
      %v2942 = vsel %vm2941, %v2934, %v2938
      %v2943 = vand.u32 2147483647, %v2086
      %vm2944 = vcmp.eq.f32.partialorder %v2943, 8.507059e+37
      %v2945 = vand.u32 %v2086, 2147483648
      %v2946 = vor.u32 1.1754944e-38, %v2945
      %v2947 = vsel %vm2944, %v2946, %v2942
      %v2948 = vmul.f32 1.0, %v2947
      %v2949 = vrcp.pop %v2087
      %v2950 = vmul.f32 %v2087, %v2949
      %v2951 = vsub.f32 1.0, %v2950
      %v2952 = vmul.f32 %v2949, %v2951
      %v2953 = vadd.f32 %v2949, %v2952
      %vm2954 = vweird.f32 %v2087
      %vm2955 = vweird.f32 %v2949
      %vm2956 = vmor %vm2954, %vm2955
      %v2957 = vsel %vm2956, %v2949, %v2953
      %v2958 = vand.u32 2147483647, %v2087
      %vm2959 = vcmp.eq.f32.partialorder %v2958, 8.507059e+37
      %v2960 = vand.u32 %v2087, 2147483648
      %v2961 = vor.u32 1.1754944e-38, %v2960
      %v2962 = vsel %vm2959, %v2961, %v2957
      %v2963 = vmul.f32 1.0, %v2962
      %v2964 = vrcp.pop %v2088
      %v2965 = vmul.f32 %v2088, %v2964
      %v2966 = vsub.f32 1.0, %v2965
      %v2967 = vmul.f32 %v2964, %v2966
      %v2968 = vadd.f32 %v2964, %v2967
      %vm2969 = vweird.f32 %v2088
      %vm2970 = vweird.f32 %v2964
      %vm2971 = vmor %vm2969, %vm2970
      %v2972 = vsel %vm2971, %v2964, %v2968
      %v2973 = vand.u32 2147483647, %v2088
      %vm2974 = vcmp.eq.f32.partialorder %v2973, 8.507059e+37
      %v2975 = vand.u32 %v2088, 2147483648
      %v2976 = vor.u32 1.1754944e-38, %v2975
      %v2977 = vsel %vm2974, %v2976, %v2972
      %v2978 = vmul.f32 1.0, %v2977
      %v2979 = vrcp.pop %v2089
      %v2980 = vmul.f32 %v2089, %v2979
      %v2981 = vsub.f32 1.0, %v2980
      %v2982 = vmul.f32 %v2979, %v2981
      %v2983 = vadd.f32 %v2979, %v2982
      %vm2984 = vweird.f32 %v2089
      %vm2985 = vweird.f32 %v2979
      %vm2986 = vmor %vm2984, %vm2985
      %v2987 = vsel %vm2986, %v2979, %v2983
      %v2988 = vand.u32 2147483647, %v2089
      %vm2989 = vcmp.eq.f32.partialorder %v2988, 8.507059e+37
      %v2990 = vand.u32 %v2089, 2147483648
      %v2991 = vor.u32 1.1754944e-38, %v2990
      %v2992 = vsel %vm2989, %v2991, %v2987
      %v2993 = vmul.f32 1.0, %v2992
      %v2994 = vrcp.pop %v2090
      %v2995 = vmul.f32 %v2090, %v2994
      %v2996 = vsub.f32 1.0, %v2995
      %v2997 = vmul.f32 %v2994, %v2996
      %v2998 = vadd.f32 %v2994, %v2997
      %vm2999 = vweird.f32 %v2090
      %vm3000 = vweird.f32 %v2994
      %vm3001 = vmor %vm2999, %vm3000
      %v3002 = vsel %vm3001, %v2994, %v2998
      %v3003 = vand.u32 2147483647, %v2090
      %vm3004 = vcmp.eq.f32.partialorder %v3003, 8.507059e+37
      %v3005 = vand.u32 %v2090, 2147483648
      %v3006 = vor.u32 1.1754944e-38, %v3005
      %v3007 = vsel %vm3004, %v3006, %v3002
      %v3008 = vmul.f32 1.0, %v3007
      %v3009 = vrcp.pop %v2091
      %v3010 = vmul.f32 %v2091, %v3009
      %v3011 = vsub.f32 1.0, %v3010
      %v3012 = vmul.f32 %v3009, %v3011
      %v3013 = vadd.f32 %v3009, %v3012
      %vm3014 = vweird.f32 %v2091
      %vm3015 = vweird.f32 %v3009
      %vm3016 = vmor %vm3014, %vm3015
      %v3017 = vsel %vm3016, %v3009, %v3013
      %v3018 = vand.u32 2147483647, %v2091
      %vm3019 = vcmp.eq.f32.partialorder %v3018, 8.507059e+37
      %v3020 = vand.u32 %v2091, 2147483648
      %v3021 = vor.u32 1.1754944e-38, %v3020
      %v3022 = vsel %vm3019, %v3021, %v3017
      %v3023 = vmul.f32 1.0, %v3022
      %v3024 = vrcp.pop %v2092
      %v3025 = vmul.f32 %v2092, %v3024
      %v3026 = vsub.f32 1.0, %v3025
      %v3027 = vmul.f32 %v3024, %v3026
      %v3028 = vadd.f32 %v3024, %v3027
      %vm3029 = vweird.f32 %v2092
      %vm3030 = vweird.f32 %v3024
      %vm3031 = vmor %vm3029, %vm3030
      %v3032 = vsel %vm3031, %v3024, %v3028
      %v3033 = vand.u32 2147483647, %v2092
      %vm3034 = vcmp.eq.f32.partialorder %v3033, 8.507059e+37
      %v3035 = vand.u32 %v2092, 2147483648
      %v3036 = vor.u32 1.1754944e-38, %v3035
      %v3037 = vsel %vm3034, %v3036, %v3032
      %v3038 = vmul.f32 1.0, %v3037
      %v3039 = vrcp.pop %v2093
      %v3040 = vmul.f32 %v2093, %v3039
      %v3041 = vsub.f32 1.0, %v3040
      %v3042 = vmul.f32 %v3039, %v3041
      %v3043 = vadd.f32 %v3039, %v3042
      %vm3044 = vweird.f32 %v2093
      %vm3045 = vweird.f32 %v3039
      %vm3046 = vmor %vm3044, %vm3045
      %v3047 = vsel %vm3046, %v3039, %v3043
      %v3048 = vand.u32 2147483647, %v2093
      %vm3049 = vcmp.eq.f32.partialorder %v3048, 8.507059e+37
      %v3050 = vand.u32 %v2093, 2147483648
      %v3051 = vor.u32 1.1754944e-38, %v3050
      %v3052 = vsel %vm3049, %v3051, %v3047
      %v3053 = vmul.f32 1.0, %v3052
      %vm3054 = vcmask 31744
      %3055 = vst.msk [vmem:[%s334] sm:$0xff] %vm3054, %v2108
      %3056 = vst.msk [vmem:[%s334 + $0x8] sm:$0xff] %vm3054, %v2123
      %3057 = vst.msk [vmem:[%s334 + $0x10] sm:$0xff] %vm3054, %v2138
      %3058 = vst.msk [vmem:[%s334 + $0x18] sm:$0xff] %vm3054, %v2153
      %3059 = vst.msk [vmem:[%s334 + $0x20] sm:$0xff] %vm3054, %v2168
      %3060 = vst.msk [vmem:[%s334 + $0x28] sm:$0xff] %vm3054, %v2183
      %3061 = vst.msk [vmem:[%s334 + $0x30] sm:$0xff] %vm3054, %v2198
      %3062 = vst.msk [vmem:[%s334 + $0x38] sm:$0xff] %vm3054, %v2213
      %3063 = vst.msk [vmem:[%s334 + $0x40] sm:$0xff] %vm3054, %v2228
      %3064 = vst.msk [vmem:[%s334 + $0x48] sm:$0xff] %vm3054, %v2243
      %3065 = vst.msk [vmem:[%s334 + $0x50] sm:$0xff] %vm3054, %v2258
      %3066 = vst.msk [vmem:[%s334 + $0x58] sm:$0xff] %vm3054, %v2273
      %3067 = vst.msk [vmem:[%s334 + $0x60] sm:$0xff] %vm3054, %v2288
      %3068 = vst.msk [vmem:[%s334 + $0x68] sm:$0xff] %vm3054, %v2303
      %3069 = vst.msk [vmem:[%s334 + $0x70] sm:$0xff] %vm3054, %v2318
      %3070 = vst.msk [vmem:[%s334 + $0x78] sm:$0xff] %vm3054, %v2333
      %3071 = vst.msk [vmem:[%s334 + $0x80] sm:$0xff] %vm3054, %v2348
      %3072 = vst.msk [vmem:[%s334 + $0x88] sm:$0xff] %vm3054, %v2363
      %3073 = vst.msk [vmem:[%s334 + $0x90] sm:$0xff] %vm3054, %v2378
      %3074 = vst.msk [vmem:[%s334 + $0x98] sm:$0xff] %vm3054, %v2393
      %3075 = vst.msk [vmem:[%s334 + $0xa0] sm:$0xff] %vm3054, %v2408
      %3076 = vst.msk [vmem:[%s334 + $0xa8] sm:$0xff] %vm3054, %v2423
      %3077 = vst.msk [vmem:[%s334 + $0xb0] sm:$0xff] %vm3054, %v2438
      %3078 = vst.msk [vmem:[%s334 + $0xb8] sm:$0xff] %vm3054, %v2453
      %3079 = vst.msk [vmem:[%s334 + $0xc0] sm:$0xff] %vm3054, %v2468
      %3080 = vst.msk [vmem:[%s334 + $0xc8] sm:$0xff] %vm3054, %v2483
      %3081 = vst.msk [vmem:[%s334 + $0xd0] sm:$0xff] %vm3054, %v2498
      %3082 = vst.msk [vmem:[%s334 + $0xd8] sm:$0xff] %vm3054, %v2513
      %3083 = vst.msk [vmem:[%s334 + $0xe0] sm:$0xff] %vm3054, %v2528
      %3084 = vst.msk [vmem:[%s334 + $0xe8] sm:$0xff] %vm3054, %v2543
      %3085 = vst.msk [vmem:[%s334 + $0xf0] sm:$0xff] %vm3054, %v2558
      %3086 = vst.msk [vmem:[%s334 + $0xf8] sm:$0xff] %vm3054, %v2573
      %3087 = vst.msk [vmem:[%s334 + $0x100] sm:$0xff] %vm3054, %v2588
      %3088 = vst.msk [vmem:[%s334 + $0x108] sm:$0xff] %vm3054, %v2603
      %3089 = vst.msk [vmem:[%s334 + $0x110] sm:$0xff] %vm3054, %v2618
      %3090 = vst.msk [vmem:[%s334 + $0x118] sm:$0xff] %vm3054, %v2633
      %3091 = vst.msk [vmem:[%s334 + $0x120] sm:$0xff] %vm3054, %v2648
      %3092 = vst.msk [vmem:[%s334 + $0x128] sm:$0xff] %vm3054, %v2663
      %3093 = vst.msk [vmem:[%s334 + $0x130] sm:$0xff] %vm3054, %v2678
      %3094 = vst.msk [vmem:[%s334 + $0x138] sm:$0xff] %vm3054, %v2693
      %3095 = vst.msk [vmem:[%s334 + $0x140] sm:$0xff] %vm3054, %v2708
      %3096 = vst.msk [vmem:[%s334 + $0x148] sm:$0xff] %vm3054, %v2723
      %3097 = vst.msk [vmem:[%s334 + $0x150] sm:$0xff] %vm3054, %v2738
      %3098 = vst.msk [vmem:[%s334 + $0x158] sm:$0xff] %vm3054, %v2753
      %3099 = vst.msk [vmem:[%s334 + $0x160] sm:$0xff] %vm3054, %v2768
      %3100 = vst.msk [vmem:[%s334 + $0x168] sm:$0xff] %vm3054, %v2783
      %3101 = vst.msk [vmem:[%s334 + $0x170] sm:$0xff] %vm3054, %v2798
      %3102 = vst.msk [vmem:[%s334 + $0x178] sm:$0xff] %vm3054, %v2813
      %3103 = vst.msk [vmem:[%s334 + $0x180] sm:$0xff] %vm3054, %v2828
      %3104 = vst.msk [vmem:[%s334 + $0x188] sm:$0xff] %vm3054, %v2843
      %3105 = vst.msk [vmem:[%s334 + $0x190] sm:$0xff] %vm3054, %v2858
      %3106 = vst.msk [vmem:[%s334 + $0x198] sm:$0xff] %vm3054, %v2873
      %3107 = vst.msk [vmem:[%s334 + $0x1a0] sm:$0xff] %vm3054, %v2888
      %3108 = vst.msk [vmem:[%s334 + $0x1a8] sm:$0xff] %vm3054, %v2903
      %3109 = vst.msk [vmem:[%s334 + $0x1b0] sm:$0xff] %vm3054, %v2918
      %3110 = vst.msk [vmem:[%s334 + $0x1b8] sm:$0xff] %vm3054, %v2933
      %3111 = vst.msk [vmem:[%s334 + $0x1c0] sm:$0xff] %vm3054, %v2948
      %3112 = vst.msk [vmem:[%s334 + $0x1c8] sm:$0xff] %vm3054, %v2963
      %3113 = vst.msk [vmem:[%s334 + $0x1d0] sm:$0xff] %vm3054, %v2978
      %3114 = vst.msk [vmem:[%s334 + $0x1d8] sm:$0xff] %vm3054, %v2993
      %3115 = vst.msk [vmem:[%s334 + $0x1e0] sm:$0xff] %vm3054, %v3008
      %3116 = vst.msk [vmem:[%s334 + $0x1e8] sm:$0xff] %vm3054, %v3023
      %3117 = vst.msk [vmem:[%s334 + $0x1f0] sm:$0xff] %vm3054, %v3038
      %3118 = vst.msk [vmem:[%s334 + $0x1f8] sm:$0xff] %vm3054, %v3053
      %s3119 = smul.u32 64, %s20
      %p3120 = scmp.lt.s32.totalorder %s3119, 127
      %s3121 = scalar_select %p3120, %s3119, 127
      %s3122 = smul.addr %s3121, 8
      %s3123 = scalar_lea.vmem %s9, %s3122
      // Predicated region
      $region57: #{basic_nn_forward.1} parent=55 // pred_check
        %p3124 = pneg %p232
      $region58: #{basic_nn_forward.1} parent=55 // pred_check_branch
        %3126 = sbr.rel (%p3124) target = $region60
      $region59: #{basic_nn_forward.1} parent=55 // pred_region
        %s3127 = smul.u32 64, %s20
      $region60: #{basic_nn_forward.1} parent=55 // pred_fallthru
        _
    $region56: #{basic_nn_forward.1} parent=5 // pred_fallthru
      _
    %p3128 = scmp.le.s32.totalorder 2, %s15
    // Predicated region
    $region61: #{basic_nn_forward.1} parent=5 // pred_check
      %p3129 = pneg %p3128
    $region62: #{basic_nn_forward.1} parent=5 // pred_check_branch
      %3131 = sbr.rel (%p3129) target = $region64
    $region63: #{basic_nn_forward.1} parent=5 // pred_region
      %s3132 = ssub.s32 %s15, 2
      // Predicated region
      $region65: #{basic_nn_forward.1} parent=63 // pred_check
        %p3133 = pneg %p238
      $region66: #{basic_nn_forward.1} parent=63 // pred_check_branch
        %3135 = sbr.rel (%p3133) target = $region68
      $region67: #{basic_nn_forward.1} parent=63 // pred_region
        %s3136 = smul.u32 64, %s21
        %p3137 = scmp.lt.s32.totalorder %s3136, 127
        %s3138 = scalar_select %p3137, %s3136, 127
        %s3139 = smul.addr %s3138, 8
        %s3140 = scalar_lea.vmem %s9, %s3139
      $region68: #{basic_nn_forward.1} parent=63 // pred_fallthru
        _
    $region64: #{basic_nn_forward.1} parent=5 // pred_fallthru
      _
  $region6: #{basic_nn_forward.1} parent=0 // loop_footer
    %s19 = sadd.s32 1, %s15
  $region7: #{basic_nn_forward.1} parent=0 // loop_footer_branch
    %14 = sbr.rel target = $region3
  $region8: #{basic_nn_forward.1} parent=0 // loop_exit
    _

</llo_original>
